<compile_context>
chip_gen: v7x
topology: tpu7x:2x2x1
jax: 0.10.0
libtpu: 0.0.40
codegen_flags: <defaults>
</compile_context>

<pallas_src>
import math

import jax
import jax.numpy as jnp
from jax import lax
from jax.experimental import pallas as pl
from jax.experimental.pallas import tpu as pltpu

WINDOW_SIZE = 11
SIGMA = 1.5
PAD = WINDOW_SIZE // 2
C1 = 0.01 ** 2
C2 = 0.03 ** 2


def _gauss_coeffs():
    g = [math.exp(-((i - PAD) ** 2) / (2.0 * SIGMA ** 2)) for i in range(WINDOW_SIZE)]
    s = sum(g)
    return [v / s for v in g]


_G = _gauss_coeffs()  # Python floats; baked into the kernel as constants.


def _band_matrix(n):
    """(n, n) zero-padded separable Gaussian blur matrix, built in-kernel.

    A[i, k] = g[k - i + PAD] (symmetric).  iotas + 11 selects: trivial VPU work
    per grid step, and AH/AW never travel over HBM nor occupy pipeline buffers.
    """
    row = lax.broadcasted_iota(jnp.int32, (n, n), 0)
    col = lax.broadcasted_iota(jnp.int32, (n, n), 1)
    d = col - row + PAD
    a = jnp.zeros((n, n), jnp.float32)
    for k in range(WINDOW_SIZE):
        a = a + jnp.where(d == k, _G[k], 0.0)
    return a


def _bcessim_kernel(x_ref, y_ref, bce_ref, ssim_ref):
    b, h, w = x_ref.shape
    # Native-dtype blocks from HBM; cast to f32 only inside the kernel.
    x = x_ref[...].astype(jnp.float32).reshape(b * h, w)   # "rows" layout
    y = y_ref[...].astype(jnp.float32).reshape(b * h, w)

    ah = _band_matrix(h)
    aw = ah if w == h else _band_matrix(w)

    def to_wide(t):
        # (B*H, W) rows -> (H, B*W) wide: image strips side by side on the lane
        # axis.  Static sublane slices + one lane-axis concatenate.
        if b == 1:
            return t
        return jnp.concatenate([t[i * h:(i + 1) * h, :] for i in range(b)], axis=1)

    def blur(z_rows):
        # W-direction: ONE (B*H, W) @ (W, W) matmul (M = B*H large).
        t = jnp.dot(z_rows, aw, preferred_element_type=jnp.float32)
        # H-direction: ONE lane-dense (H, H) @ (H, B*W) matmul (N = B*W large).
        return jnp.dot(ah, to_wide(t), preferred_element_type=jnp.float32)

    # --- SSIM map (pytorch_ssim._ssim semantics), computed in wide layout ---
    mu1 = blur(x)
    mu2 = blur(y)
    mu1_sq = mu1 * mu1
    mu2_sq = mu2 * mu2
    mu1_mu2 = mu1 * mu2
    sigma1_sq = blur(x * x) - mu1_sq
    sigma2_sq = blur(y * y) - mu2_sq
    sigma12 = blur(x * y) - mu1_mu2

    num = (2.0 * mu1_mu2 + C1) * (2.0 * sigma12 + C2)
    den = (mu1_sq + mu2_sq + C1) * (sigma1_sq + sigma2_sq + C2)
    inv = pl.reciprocal(den, approx=True)     # EUP slot
    inv = inv * (2.0 - den * inv)             # one Newton step (VPU)
    ssim_map = num * inv                      # (H, B*W)

    # --- BCE map (nn.BCELoss, logs clamped at -100), rows layout ---
    log_x = jnp.maximum(jnp.log(x), -100.0)
    log_1mx = jnp.maximum(jnp.log(1.0 - x), -100.0)
    bce_map = -(y * log_x + (1.0 - y) * log_1mx)   # (B*H, W)

    # Per-lane partial sums per grid step; final mean + 0.8/0.2 combine in JAX.
    bce_ref[...] = jnp.sum(bce_map, axis=0, keepdims=True).reshape(1, 1, w)
    ssim_ref[...] = jnp.sum(ssim_map, axis=0, keepdims=True).reshape(1, 1, b * w)


_DEFAULT_VMEM = 128 * 1024 * 1024


def _vmem_capacity_bytes():
    try:
        return int(pltpu.get_tpu_info().vmem_capacity_bytes)
    except Exception:
        return _DEFAULT_VMEM


def _vmem_budgets():
    """(working_set_budget, vmem_limit_bytes) derived from physical VMEM."""
    cap = _vmem_capacity_bytes()
    if cap >= 96 * 1024 * 1024:
        # v5e / v6e: 128 MiB physical -> go big per step.
        return cap // 4, min(100 * 1024 * 1024, (cap * 3) // 4)
    # v7x: 64 MiB per TensorCore -> conservative.
    return cap // 8, (cap * 5) // 8


def _pick_batch(nc, h, w, in_bytes_per_elem, ws_budget):
    """Images per grid step.

    Largest divisor of nc that (a) fits the working-set budget, (b) keeps the
    unrolled rows->wide relayout loop sane, and (c) leaves G >= 2 grid steps so
    v7x can shard the parallel axis over both TensorCores and every generation
    overlaps input DMA with compute.
    """
    per_img = 16 * h * w * 4 + 2 * h * w * in_bytes_per_elem  # f32 temps + 2x-buffered inputs
    fixed = 8 * (h * h + w * w) + (1 << 20)                   # AH/AW + slack
    cap = max(1, (ws_budget - fixed) // per_img)
    cap = min(cap, 128)
    if nc > 1:
        cap = min(cap, nc // 2)
    cap = max(1, min(cap, nc))
    best = 1
    for d in range(1, int(cap) + 1):
        if nc % d == 0:
            best = d
    return best


def bcessim(outputs, labels):
    """outputs, labels: (N, C, H, W). Returns scalar float32 loss."""
    N, C, H, W = outputs.shape
    nc = N * C
    # No forced f32 cast here: keep native dtype for the HBM->VMEM DMAs.
    x = outputs.reshape(nc, H, W)
    y = labels.reshape(nc, H, W)

    ws_budget, vmem_limit = _vmem_budgets()
    in_bytes = 2 * (jnp.dtype(x.dtype).itemsize + jnp.dtype(y.dtype).itemsize)
    B = _pick_batch(nc, H, W, in_bytes, ws_budget)
    G = nc // B

    bce_parts, ssim_parts = pl.pallas_call(
        _bcessim_kernel,
        out_shape=(jax.ShapeDtypeStruct((G, 1, W), jnp.float32),
                   jax.ShapeDtypeStruct((G, 1, B * W), jnp.float32)),
        grid_spec=pltpu.PrefetchScalarGridSpec(
            num_scalar_prefetch=0,
            grid=(G,),
            in_specs=[
                pl.BlockSpec((B, H, W), lambda i: (i, 0, 0)),
                pl.BlockSpec((B, H, W), lambda i: (i, 0, 0)),
            ],
            out_specs=[
                pl.BlockSpec((1, 1, W), lambda i: (i, 0, 0)),
                pl.BlockSpec((1, 1, B * W), lambda i: (i, 0, 0)),
            ],
        ),
        compiler_params=pltpu.CompilerParams(
            dimension_semantics=("parallel",),
            vmem_limit_bytes=int(vmem_limit)),
    )(x, y)

    n_elem = float(nc * H * W)
    bce = jnp.sum(bce_parts) / n_elem
    ssim = jnp.sum(ssim_parts) / n_elem
    return 0.8 * bce + 0.2 * (1.0 - ssim)


def bcessim_reference(outputs, labels):
    """Pure-JAX reference matching the PyTorch module."""
    x = outputs.astype(jnp.float32)
    y = labels.astype(jnp.float32)
    N, C, H, W = x.shape
    g = jnp.asarray(_G, dtype=jnp.float32)
    w2 = jnp.outer(g, g)
    kern = jnp.broadcast_to(w2, (C, 1, WINDOW_SIZE, WINDOW_SIZE)).astype(jnp.float32)
    pad = WINDOW_SIZE // 2

    def blur(z):
        return lax.conv_general_dilated(
            z, kern, window_strides=(1, 1), padding=[(pad, pad), (pad, pad)],
            dimension_numbers=("NCHW", "OIHW", "NCHW"), feature_group_count=C)

    mu1, mu2 = blur(x), blur(y)
    mu1_sq, mu2_sq, mu1_mu2 = mu1 * mu1, mu2 * mu2, mu1 * mu2
    sigma1_sq = blur(x * x) - mu1_sq
    sigma2_sq = blur(y * y) - mu2_sq
    sigma12 = blur(x * y) - mu1_mu2
    ssim_map = ((2.0 * mu1_mu2 + C1) * (2.0 * sigma12 + C2)) / (
        (mu1_sq + mu2_sq + C1) * (sigma1_sq + sigma2_sq + C2))
    ssim = jnp.mean(ssim_map)

    log_x = jnp.maximum(jnp.log(x), -100.0)
    log_1mx = jnp.maximum(jnp.log(1.0 - x), -100.0)
    bce = jnp.mean(-(y * log_x + (1.0 - y) * log_1mx))
    return 0.8 * bce + 0.2 * (1.0 - ssim)


if __name__ == "__main__":
    key = jax.random.PRNGKey(0)
    k1, k2 = jax.random.split(key)
    N, C, H, W = 2, 4, 16, 16
    # outputs must be probabilities in (0, 1) for BCELoss
    outputs = jax.nn.sigmoid(jax.random.normal(k1, (N, C, H, W), dtype=jnp.float32))
    labels = (jax.random.uniform(k2, (N, C, H, W)) > 0.5).astype(jnp.float32)

    loss = jax.block_until_ready(bcessim(outputs, labels))
    ref = jax.block_until_ready(bcessim_reference(outputs, labels))

    if not jnp.allclose(loss, ref, rtol=1e-3, atol=1e-3):
        raise AssertionError(f"mismatch: pallas={loss} reference={ref}")
    print("KERNEL_OK")
</pallas_src>

<mosaic_0001>
module attributes {stable_mosaic.version = 11 : i64} {
  func.func @_bcessim_kernel(%arg0: i32, %arg1: memref<4x16x16xf32, #tpu.memory_space<vmem>>, %arg2: memref<4x16x16xf32, #tpu.memory_space<vmem>>, %arg3: memref<1x1x16xf32, #tpu.memory_space<vmem>>, %arg4: memref<1x1x64xf32, #tpu.memory_space<vmem>>) attributes {dimension_semantics = [#tpu.dimension_semantics<parallel>], iteration_bounds = array<i64: 2>, scalar_prefetch = 0 : i64, scratch_operands = 0 : i64, tpu.core_type = #tpu.core_type<tc>, window_params = [{transform_indices = @transform_0, window_bounds = array<i64: 4, 16, 16>}, {transform_indices = @transform_1, window_bounds = array<i64: 4, 16, 16>}, {transform_indices = @transform_2, window_bounds = array<i64: 1, 1, 16>}, {transform_indices = @transform_3, window_bounds = array<i64: 1, 1, 64>}]} {
    %c0 = arith.constant 0 : index
    %c0_0 = arith.constant 0 : index
    %c0_1 = arith.constant 0 : index
    %0 = vector.load %arg1[%c0, %c0_0, %c0_1] : memref<4x16x16xf32, #tpu.memory_space<vmem>>, vector<4x16x16xf32>
    %1 = vector.shape_cast %0 : vector<4x16x16xf32> to vector<64x16xf32>
    %c0_2 = arith.constant 0 : index
    %c0_3 = arith.constant 0 : index
    %c0_4 = arith.constant 0 : index
    %2 = vector.load %arg2[%c0_2, %c0_3, %c0_4] : memref<4x16x16xf32, #tpu.memory_space<vmem>>, vector<4x16x16xf32>
    %3 = vector.shape_cast %2 : vector<4x16x16xf32> to vector<64x16xf32>
    %4 = tpu.iota {dimensions = array<i32: 0>} : vector<16x16xi32>
    %5 = tpu.iota {dimensions = array<i32: 1>} : vector<16x16xi32>
    %6 = arith.subi %5, %4 : vector<16x16xi32>
    %c5_i32 = arith.constant 5 : i32
    %7 = vector.broadcast %c5_i32 : i32 to vector<16x16xi32>
    %8 = arith.addi %6, %7 : vector<16x16xi32>
    %cst = arith.constant 0.000000e+00 : f32
    %9 = vector.broadcast %cst : f32 to vector<16x16xf32>
    %c0_i32 = arith.constant 0 : i32
    %10 = vector.broadcast %c0_i32 : i32 to vector<16x16xi32>
    %11 = arith.cmpi eq, %8, %10 : vector<16x16xi32>
    %cst_5 = arith.constant 0.00102838012 : f32
    %cst_6 = arith.constant 0.000000e+00 : f32
    %12 = vector.broadcast %cst_5 : f32 to vector<16x16xf32>
    %13 = vector.broadcast %cst_6 : f32 to vector<16x16xf32>
    %14 = arith.select %11, %12, %13 : vector<16x16xi1>, vector<16x16xf32>
    %15 = arith.addf %9, %14 : vector<16x16xf32>
    %c1_i32 = arith.constant 1 : i32
    %16 = vector.broadcast %c1_i32 : i32 to vector<16x16xi32>
    %17 = arith.cmpi eq, %8, %16 : vector<16x16xi32>
    %cst_7 = arith.constant 0.00759875821 : f32
    %cst_8 = arith.constant 0.000000e+00 : f32
    %18 = vector.broadcast %cst_7 : f32 to vector<16x16xf32>
    %19 = vector.broadcast %cst_8 : f32 to vector<16x16xf32>
    %20 = arith.select %17, %18, %19 : vector<16x16xi1>, vector<16x16xf32>
    %21 = arith.addf %15, %20 : vector<16x16xf32>
    %c2_i32 = arith.constant 2 : i32
    %22 = vector.broadcast %c2_i32 : i32 to vector<16x16xi32>
    %23 = arith.cmpi eq, %8, %22 : vector<16x16xi32>
    %cst_9 = arith.constant 0.0360007733 : f32
    %cst_10 = arith.constant 0.000000e+00 : f32
    %24 = vector.broadcast %cst_9 : f32 to vector<16x16xf32>
    %25 = vector.broadcast %cst_10 : f32 to vector<16x16xf32>
    %26 = arith.select %23, %24, %25 : vector<16x16xi1>, vector<16x16xf32>
    %27 = arith.addf %21, %26 : vector<16x16xf32>
    %c3_i32 = arith.constant 3 : i32
    %28 = vector.broadcast %c3_i32 : i32 to vector<16x16xi32>
    %29 = arith.cmpi eq, %8, %28 : vector<16x16xi32>
    %cst_11 = arith.constant 0.109360687 : f32
    %cst_12 = arith.constant 0.000000e+00 : f32
    %30 = vector.broadcast %cst_11 : f32 to vector<16x16xf32>
    %31 = vector.broadcast %cst_12 : f32 to vector<16x16xf32>
    %32 = arith.select %29, %30, %31 : vector<16x16xi1>, vector<16x16xf32>
    %33 = arith.addf %27, %32 : vector<16x16xf32>
    %c4_i32 = arith.constant 4 : i32
    %34 = vector.broadcast %c4_i32 : i32 to vector<16x16xi32>
    %35 = arith.cmpi eq, %8, %34 : vector<16x16xi32>
    %cst_13 = arith.constant 0.213005543 : f32
    %cst_14 = arith.constant 0.000000e+00 : f32
    %36 = vector.broadcast %cst_13 : f32 to vector<16x16xf32>
    %37 = vector.broadcast %cst_14 : f32 to vector<16x16xf32>
    %38 = arith.select %35, %36, %37 : vector<16x16xi1>, vector<16x16xf32>
    %39 = arith.addf %33, %38 : vector<16x16xf32>
    %c5_i32_15 = arith.constant 5 : i32
    %40 = vector.broadcast %c5_i32_15 : i32 to vector<16x16xi32>
    %41 = arith.cmpi eq, %8, %40 : vector<16x16xi32>
    %cst_16 = arith.constant 0.266011715 : f32
    %cst_17 = arith.constant 0.000000e+00 : f32
    %42 = vector.broadcast %cst_16 : f32 to vector<16x16xf32>
    %43 = vector.broadcast %cst_17 : f32 to vector<16x16xf32>
    %44 = arith.select %41, %42, %43 : vector<16x16xi1>, vector<16x16xf32>
    %45 = arith.addf %39, %44 : vector<16x16xf32>
    %c6_i32 = arith.constant 6 : i32
    %46 = vector.broadcast %c6_i32 : i32 to vector<16x16xi32>
    %47 = arith.cmpi eq, %8, %46 : vector<16x16xi32>
    %cst_18 = arith.constant 0.213005543 : f32
    %cst_19 = arith.constant 0.000000e+00 : f32
    %48 = vector.broadcast %cst_18 : f32 to vector<16x16xf32>
    %49 = vector.broadcast %cst_19 : f32 to vector<16x16xf32>
    %50 = arith.select %47, %48, %49 : vector<16x16xi1>, vector<16x16xf32>
    %51 = arith.addf %45, %50 : vector<16x16xf32>
    %c7_i32 = arith.constant 7 : i32
    %52 = vector.broadcast %c7_i32 : i32 to vector<16x16xi32>
    %53 = arith.cmpi eq, %8, %52 : vector<16x16xi32>
    %cst_20 = arith.constant 0.109360687 : f32
    %cst_21 = arith.constant 0.000000e+00 : f32
    %54 = vector.broadcast %cst_20 : f32 to vector<16x16xf32>
    %55 = vector.broadcast %cst_21 : f32 to vector<16x16xf32>
    %56 = arith.select %53, %54, %55 : vector<16x16xi1>, vector<16x16xf32>
    %57 = arith.addf %51, %56 : vector<16x16xf32>
    %c8_i32 = arith.constant 8 : i32
    %58 = vector.broadcast %c8_i32 : i32 to vector<16x16xi32>
    %59 = arith.cmpi eq, %8, %58 : vector<16x16xi32>
    %cst_22 = arith.constant 0.0360007733 : f32
    %cst_23 = arith.constant 0.000000e+00 : f32
    %60 = vector.broadcast %cst_22 : f32 to vector<16x16xf32>
    %61 = vector.broadcast %cst_23 : f32 to vector<16x16xf32>
    %62 = arith.select %59, %60, %61 : vector<16x16xi1>, vector<16x16xf32>
    %63 = arith.addf %57, %62 : vector<16x16xf32>
    %c9_i32 = arith.constant 9 : i32
    %64 = vector.broadcast %c9_i32 : i32 to vector<16x16xi32>
    %65 = arith.cmpi eq, %8, %64 : vector<16x16xi32>
    %cst_24 = arith.constant 0.00759875821 : f32
    %cst_25 = arith.constant 0.000000e+00 : f32
    %66 = vector.broadcast %cst_24 : f32 to vector<16x16xf32>
    %67 = vector.broadcast %cst_25 : f32 to vector<16x16xf32>
    %68 = arith.select %65, %66, %67 : vector<16x16xi1>, vector<16x16xf32>
    %69 = arith.addf %63, %68 : vector<16x16xf32>
    %c10_i32 = arith.constant 10 : i32
    %70 = vector.broadcast %c10_i32 : i32 to vector<16x16xi32>
    %71 = arith.cmpi eq, %8, %70 : vector<16x16xi32>
    %cst_26 = arith.constant 0.00102838012 : f32
    %cst_27 = arith.constant 0.000000e+00 : f32
    %72 = vector.broadcast %cst_26 : f32 to vector<16x16xf32>
    %73 = vector.broadcast %cst_27 : f32 to vector<16x16xf32>
    %74 = arith.select %71, %72, %73 : vector<16x16xi1>, vector<16x16xf32>
    %75 = arith.addf %69, %74 : vector<16x16xf32>
    %cst_28 = arith.constant dense<0.000000e+00> : vector<64x16xf32>
    %76 = tpu.matmul %1, %75, %cst_28 {dimension_numbers = #tpu.dot_dimension_numbers<[1], [0], [0], [1], [0, 0, 1, 1], [], []>} : vector<64x16xf32>, vector<16x16xf32>, vector<64x16xf32> -> vector<64x16xf32>
    %77 = vector.extract_strided_slice %76 {offsets = [0, 0], sizes = [16, 16], strides = [1, 1]} : vector<64x16xf32> to vector<16x16xf32>
    %78 = vector.extract_strided_slice %76 {offsets = [16, 0], sizes = [16, 16], strides = [1, 1]} : vector<64x16xf32> to vector<16x16xf32>
    %79 = vector.extract_strided_slice %76 {offsets = [32, 0], sizes = [16, 16], strides = [1, 1]} : vector<64x16xf32> to vector<16x16xf32>
    %80 = vector.extract_strided_slice %76 {offsets = [48, 0], sizes = [16, 16], strides = [1, 1]} : vector<64x16xf32> to vector<16x16xf32>
    %81 = tpu.concatenate %77, %78, %79, %80 in 1 : vector<16x16xf32>, vector<16x16xf32>, vector<16x16xf32>, vector<16x16xf32> -> vector<16x64xf32>
    %cst_29 = arith.constant dense<0.000000e+00> : vector<16x64xf32>
    %82 = tpu.matmul %75, %81, %cst_29 {dimension_numbers = #tpu.dot_dimension_numbers<[1], [0], [0], [1], [0, 0, 1, 1], [], []>} : vector<16x16xf32>, vector<16x64xf32>, vector<16x64xf32> -> vector<16x64xf32>
    %cst_30 = arith.constant dense<0.000000e+00> : vector<64x16xf32>
    %83 = tpu.matmul %3, %75, %cst_30 {dimension_numbers = #tpu.dot_dimension_numbers<[1], [0], [0], [1], [0, 0, 1, 1], [], []>} : vector<64x16xf32>, vector<16x16xf32>, vector<64x16xf32> -> vector<64x16xf32>
    %84 = vector.extract_strided_slice %83 {offsets = [0, 0], sizes = [16, 16], strides = [1, 1]} : vector<64x16xf32> to vector<16x16xf32>
    %85 = vector.extract_strided_slice %83 {offsets = [16, 0], sizes = [16, 16], strides = [1, 1]} : vector<64x16xf32> to vector<16x16xf32>
    %86 = vector.extract_strided_slice %83 {offsets = [32, 0], sizes = [16, 16], strides = [1, 1]} : vector<64x16xf32> to vector<16x16xf32>
    %87 = vector.extract_strided_slice %83 {offsets = [48, 0], sizes = [16, 16], strides = [1, 1]} : vector<64x16xf32> to vector<16x16xf32>
    %88 = tpu.concatenate %84, %85, %86, %87 in 1 : vector<16x16xf32>, vector<16x16xf32>, vector<16x16xf32>, vector<16x16xf32> -> vector<16x64xf32>
    %cst_31 = arith.constant dense<0.000000e+00> : vector<16x64xf32>
    %89 = tpu.matmul %75, %88, %cst_31 {dimension_numbers = #tpu.dot_dimension_numbers<[1], [0], [0], [1], [0, 0, 1, 1], [], []>} : vector<16x16xf32>, vector<16x64xf32>, vector<16x64xf32> -> vector<16x64xf32>
    %90 = arith.mulf %82, %82 : vector<16x64xf32>
    %91 = arith.mulf %89, %89 : vector<16x64xf32>
    %92 = arith.mulf %82, %89 : vector<16x64xf32>
    %93 = arith.mulf %1, %1 : vector<64x16xf32>
    %cst_32 = arith.constant dense<0.000000e+00> : vector<64x16xf32>
    %94 = tpu.matmul %93, %75, %cst_32 {dimension_numbers = #tpu.dot_dimension_numbers<[1], [0], [0], [1], [0, 0, 1, 1], [], []>} : vector<64x16xf32>, vector<16x16xf32>, vector<64x16xf32> -> vector<64x16xf32>
    %95 = vector.extract_strided_slice %94 {offsets = [0, 0], sizes = [16, 16], strides = [1, 1]} : vector<64x16xf32> to vector<16x16xf32>
    %96 = vector.extract_strided_slice %94 {offsets = [16, 0], sizes = [16, 16], strides = [1, 1]} : vector<64x16xf32> to vector<16x16xf32>
    %97 = vector.extract_strided_slice %94 {offsets = [32, 0], sizes = [16, 16], strides = [1, 1]} : vector<64x16xf32> to vector<16x16xf32>
    %98 = vector.extract_strided_slice %94 {offsets = [48, 0], sizes = [16, 16], strides = [1, 1]} : vector<64x16xf32> to vector<16x16xf32>
    %99 = tpu.concatenate %95, %96, %97, %98 in 1 : vector<16x16xf32>, vector<16x16xf32>, vector<16x16xf32>, vector<16x16xf32> -> vector<16x64xf32>
    %cst_33 = arith.constant dense<0.000000e+00> : vector<16x64xf32>
    %100 = tpu.matmul %75, %99, %cst_33 {dimension_numbers = #tpu.dot_dimension_numbers<[1], [0], [0], [1], [0, 0, 1, 1], [], []>} : vector<16x16xf32>, vector<16x64xf32>, vector<16x64xf32> -> vector<16x64xf32>
    %101 = arith.subf %100, %90 : vector<16x64xf32>
    %102 = arith.mulf %3, %3 : vector<64x16xf32>
    %cst_34 = arith.constant dense<0.000000e+00> : vector<64x16xf32>
    %103 = tpu.matmul %102, %75, %cst_34 {dimension_numbers = #tpu.dot_dimension_numbers<[1], [0], [0], [1], [0, 0, 1, 1], [], []>} : vector<64x16xf32>, vector<16x16xf32>, vector<64x16xf32> -> vector<64x16xf32>
    %104 = vector.extract_strided_slice %103 {offsets = [0, 0], sizes = [16, 16], strides = [1, 1]} : vector<64x16xf32> to vector<16x16xf32>
    %105 = vector.extract_strided_slice %103 {offsets = [16, 0], sizes = [16, 16], strides = [1, 1]} : vector<64x16xf32> to vector<16x16xf32>
    %106 = vector.extract_strided_slice %103 {offsets = [32, 0], sizes = [16, 16], strides = [1, 1]} : vector<64x16xf32> to vector<16x16xf32>
    %107 = vector.extract_strided_slice %103 {offsets = [48, 0], sizes = [16, 16], strides = [1, 1]} : vector<64x16xf32> to vector<16x16xf32>
    %108 = tpu.concatenate %104, %105, %106, %107 in 1 : vector<16x16xf32>, vector<16x16xf32>, vector<16x16xf32>, vector<16x16xf32> -> vector<16x64xf32>
    %cst_35 = arith.constant dense<0.000000e+00> : vector<16x64xf32>
    %109 = tpu.matmul %75, %108, %cst_35 {dimension_numbers = #tpu.dot_dimension_numbers<[1], [0], [0], [1], [0, 0, 1, 1], [], []>} : vector<16x16xf32>, vector<16x64xf32>, vector<16x64xf32> -> vector<16x64xf32>
    %110 = arith.subf %109, %91 : vector<16x64xf32>
    %111 = arith.mulf %1, %3 : vector<64x16xf32>
    %cst_36 = arith.constant dense<0.000000e+00> : vector<64x16xf32>
    %112 = tpu.matmul %111, %75, %cst_36 {dimension_numbers = #tpu.dot_dimension_numbers<[1], [0], [0], [1], [0, 0, 1, 1], [], []>} : vector<64x16xf32>, vector<16x16xf32>, vector<64x16xf32> -> vector<64x16xf32>
    %113 = vector.extract_strided_slice %112 {offsets = [0, 0], sizes = [16, 16], strides = [1, 1]} : vector<64x16xf32> to vector<16x16xf32>
    %114 = vector.extract_strided_slice %112 {offsets = [16, 0], sizes = [16, 16], strides = [1, 1]} : vector<64x16xf32> to vector<16x16xf32>
    %115 = vector.extract_strided_slice %112 {offsets = [32, 0], sizes = [16, 16], strides = [1, 1]} : vector<64x16xf32> to vector<16x16xf32>
    %116 = vector.extract_strided_slice %112 {offsets = [48, 0], sizes = [16, 16], strides = [1, 1]} : vector<64x16xf32> to vector<16x16xf32>
    %117 = tpu.concatenate %113, %114, %115, %116 in 1 : vector<16x16xf32>, vector<16x16xf32>, vector<16x16xf32>, vector<16x16xf32> -> vector<16x64xf32>
    %cst_37 = arith.constant dense<0.000000e+00> : vector<16x64xf32>
    %118 = tpu.matmul %75, %117, %cst_37 {dimension_numbers = #tpu.dot_dimension_numbers<[1], [0], [0], [1], [0, 0, 1, 1], [], []>} : vector<16x16xf32>, vector<16x64xf32>, vector<16x64xf32> -> vector<16x64xf32>
    %119 = arith.subf %118, %92 : vector<16x64xf32>
    %cst_38 = arith.constant 2.000000e+00 : f32
    %120 = vector.broadcast %cst_38 : f32 to vector<16x64xf32>
    %121 = arith.mulf %120, %92 : vector<16x64xf32>
    %cst_39 = arith.constant 9.99999974E-5 : f32
    %122 = vector.broadcast %cst_39 : f32 to vector<16x64xf32>
    %123 = arith.addf %121, %122 : vector<16x64xf32>
    %cst_40 = arith.constant 2.000000e+00 : f32
    %124 = vector.broadcast %cst_40 : f32 to vector<16x64xf32>
    %125 = arith.mulf %124, %119 : vector<16x64xf32>
    %cst_41 = arith.constant 8.99999984E-4 : f32
    %126 = vector.broadcast %cst_41 : f32 to vector<16x64xf32>
    %127 = arith.addf %125, %126 : vector<16x64xf32>
    %128 = arith.mulf %123, %127 : vector<16x64xf32>
    %129 = arith.addf %90, %91 : vector<16x64xf32>
    %cst_42 = arith.constant 9.99999974E-5 : f32
    %130 = vector.broadcast %cst_42 : f32 to vector<16x64xf32>
    %131 = arith.addf %129, %130 : vector<16x64xf32>
    %132 = arith.addf %101, %110 : vector<16x64xf32>
    %cst_43 = arith.constant 8.99999984E-4 : f32
    %133 = vector.broadcast %cst_43 : f32 to vector<16x64xf32>
    %134 = arith.addf %132, %133 : vector<16x64xf32>
    %135 = arith.mulf %131, %134 : vector<16x64xf32>
    %136 = tpu.reciprocal %135 {approx = true} : vector<16x64xf32> -> vector<16x64xf32>
    %137 = arith.mulf %135, %136 : vector<16x64xf32>
    %cst_44 = arith.constant 2.000000e+00 : f32
    %138 = vector.broadcast %cst_44 : f32 to vector<16x64xf32>
    %139 = arith.subf %138, %137 : vector<16x64xf32>
    %140 = arith.mulf %136, %139 : vector<16x64xf32>
    %141 = arith.mulf %128, %140 : vector<16x64xf32>
    %142 = math.log %1 : vector<64x16xf32>
    %cst_45 = arith.constant -1.000000e+02 : f32
    %143 = vector.broadcast %cst_45 : f32 to vector<64x16xf32>
    %144 = arith.maximumf %142, %143 : vector<64x16xf32>
    %cst_46 = arith.constant 1.000000e+00 : f32
    %145 = vector.broadcast %cst_46 : f32 to vector<64x16xf32>
    %146 = arith.subf %145, %1 : vector<64x16xf32>
    %147 = math.log %146 : vector<64x16xf32>
    %cst_47 = arith.constant -1.000000e+02 : f32
    %148 = vector.broadcast %cst_47 : f32 to vector<64x16xf32>
    %149 = arith.maximumf %147, %148 : vector<64x16xf32>
    %150 = arith.mulf %3, %144 : vector<64x16xf32>
    %cst_48 = arith.constant 1.000000e+00 : f32
    %151 = vector.broadcast %cst_48 : f32 to vector<64x16xf32>
    %152 = arith.subf %151, %3 : vector<64x16xf32>
    %153 = arith.mulf %152, %149 : vector<64x16xf32>
    %154 = arith.addf %150, %153 : vector<64x16xf32>
    %cst_49 = arith.constant 0.000000e+00 : f32
    %155 = vector.broadcast %cst_49 : f32 to vector<64x16xf32>
    %156 = arith.subf %155, %154 : vector<64x16xf32>
    %cst_50 = arith.constant dense<0.000000e+00> : vector<16xf32>
    %157 = vector.multi_reduction <add>, %156, %cst_50 [0] : vector<64x16xf32> to vector<16xf32>
    %158 = vector.shape_cast %157 : vector<16xf32> to vector<1x16xf32>
    %159 = vector.shape_cast %158 : vector<1x16xf32> to vector<1x1x16xf32>
    %c0_51 = arith.constant 0 : index
    %c0_52 = arith.constant 0 : index
    %c0_53 = arith.constant 0 : index
    %160 = vector.load %arg3[%c0_51, %c0_52, %c0_53] : memref<1x1x16xf32, #tpu.memory_space<vmem>>, vector<1x1x16xf32>
    tpu.vector_store %arg3[%c0_51, %c0_52, %c0_53], %159 {strides = array<i32>} : memref<1x1x16xf32, #tpu.memory_space<vmem>>, vector<1x1x16xf32>,
    %cst_54 = arith.constant dense<0.000000e+00> : vector<64xf32>
    %161 = vector.multi_reduction <add>, %141, %cst_54 [0] : vector<16x64xf32> to vector<64xf32>
    %162 = vector.shape_cast %161 : vector<64xf32> to vector<1x64xf32>
    %163 = vector.shape_cast %162 : vector<1x64xf32> to vector<1x1x64xf32>
    %c0_55 = arith.constant 0 : index
    %c0_56 = arith.constant 0 : index
    %c0_57 = arith.constant 0 : index
    %164 = vector.load %arg4[%c0_55, %c0_56, %c0_57] : memref<1x1x64xf32, #tpu.memory_space<vmem>>, vector<1x1x64xf32>
    tpu.vector_store %arg4[%c0_55, %c0_56, %c0_57], %163 {strides = array<i32>} : memref<1x1x64xf32, #tpu.memory_space<vmem>>, vector<1x1x64xf32>,
    return
  }
  func.func @transform_0(%arg0: i32) -> (i32, i32, i32) {
    %c0_i32 = arith.constant 0 : i32
    %c0_i32_0 = arith.constant 0 : i32
    %c0_i32_1 = arith.constant 0 : i32
    return %arg0, %c0_i32, %c0_i32_0 : i32, i32, i32
  }
  func.func @transform_1(%arg0: i32) -> (i32, i32, i32) {
    %c0_i32 = arith.constant 0 : i32
    %c0_i32_0 = arith.constant 0 : i32
    %c0_i32_1 = arith.constant 0 : i32
    return %arg0, %c0_i32, %c0_i32_0 : i32, i32, i32
  }
  func.func @transform_2(%arg0: i32) -> (i32, i32, i32) {
    %c0_i32 = arith.constant 0 : i32
    %c0_i32_0 = arith.constant 0 : i32
    %c0_i32_1 = arith.constant 0 : i32
    return %arg0, %c0_i32, %c0_i32_0 : i32, i32, i32
  }
  func.func @transform_3(%arg0: i32) -> (i32, i32, i32) {
    %c0_i32 = arith.constant 0 : i32
    %c0_i32_0 = arith.constant 0 : i32
    %c0_i32_1 = arith.constant 0 : i32
    return %arg0, %c0_i32, %c0_i32_0 : i32, i32, i32
  }
}

</mosaic_0001>

<llo_original>
// kernel: tpu_custom_call.1
$region0: #{tpu_custom_call.1}
  #allocation0 [shape = 'u32[]', space=smem, size = 0x4, offset = 0x4, fixed_abs, tag = 'smem constant byte address 0x4 - core index']
  #allocation1 [shape = 'u32[144,128]{1,0:T(1,128)}', space=vmem, size = 0x12000, scoped, tag = 'internal scratch']
  %s0 = inlined_call_operand.hbm [shape: f32[8,16,16], index: 0, kind: input, shape index: {}]
  %s1 = inlined_call_operand.hbm [shape: f32[8,16,16], index: 1, kind: input, shape index: {}]
  %s2 = inlined_call_operand.hbm [shape: f32[2,1,16], index: 2, kind: output, shape index: {0}]
  %s3 = inlined_call_operand.hbm [shape: f32[2,1,64], index: 3, kind: output, shape index: {1}]
  %4 = xla_tuple %s2, %s3
  %s5 = sld [smem:[#allocation0]]
  $region57: #{tpu_custom_call.1} parent=0
    _
  %s7 = ssub.s32 1, %s5
  %s8 = scalar_select 0, %s7, %s5
  $region1: #{tpu_custom_call.1} parent=0
    #allocation2 [shape = 'u8[65536]{0}', space=vmem, size = 0x10000, scoped, tag = 'input window, operand 0']
    #allocation3 [shape = 's32[2]{0}', space=sflag, size = 0x8, scoped, tag = 'scoped memory for tpu_custom_call.1']
    #allocation4 [shape = 's32[2]{0}', space=sflag, size = 0x8, scoped, tag = 'scoped memory for tpu_custom_call.1']
    #allocation5 [shape = 'u8[65536]{0}', space=vmem, size = 0x10000, scoped, tag = 'input window, operand 1']
    #allocation6 [shape = 's32[2]{0}', space=sflag, size = 0x8, scoped, tag = 'scoped memory for tpu_custom_call.1']
    #allocation7 [shape = 'u8[1024]{0}', space=vmem, size = 0x400, scoped, tag = 'output window, operand 0']
    #allocation8 [shape = 'u8[1024]{0}', space=vmem, size = 0x400, scoped, tag = 'output window, operand 1']
    #allocation9 [shape = 's32[2]{0}', space=sflag, size = 0x8, scoped, tag = 'scoped memory for tpu_custom_call.1']
    %9 = vsyncpa [#allocation3], 0
    %s10 = scalar_lea.sflag [#allocation3], 1
    %11 = vsyncpa %s10, 0
    %12 = vsyncpa [#allocation6], 0
    %s13 = scalar_lea.sflag [#allocation6], 1
    %14 = vsyncpa %s13, 0
    %15 = vsyncpa [#allocation4], 0
    %s16 = scalar_lea.sflag [#allocation4], 1
    %17 = vsyncpa %s16, 0
    %18 = vsyncpa [#allocation9], 0
    %s19 = scalar_lea.sflag [#allocation9], 1
    %20 = vsyncpa %s19, 0
    loop: start=0, step=1, limit=4
    $region2: #{tpu_custom_call.1} parent=1 // loop_pre_header
      _
    $region3: #{tpu_custom_call.1} parent=1 // loop_header
      %s22 = sphi 0, %s26
      %p23 = scmp.ge.s32.totalorder %s22, 4
      %s32 = sphi 0, %s34
      %s35 = sphi 0, %s32
      %s36 = sphi 0, %s35
      %s52 = sphi 0, %s36
      %s58 = sphi 0, %s60
      %s61 = sphi 0, %s58
      %s62 = sphi 0, %s61
      %s78 = sphi 0, %s62
      %s84 = sphi 0, %s86
      %s87 = sphi 0, %s84
      %s88 = sphi 0, %s87
      %s104 = sphi 0, %s88
      %s110 = sphi 0, %s112
      %s113 = sphi 0, %s110
      %s114 = sphi 0, %s113
      %s130 = sphi 0, %s114
    $region4: #{tpu_custom_call.1} parent=1 // loop_header_branch
      %25 = sbr.rel (%p23) target = $region8
    $region5: #{tpu_custom_call.1} parent=1 // loop_body
      %s27 = ssub.s32 %s22, 1
      %s28 = ssub.s32 %s22, 2
      %s29 = sadd.s32 %s22, 1
      %s30 = ssub.s32 %s22, %s29
      %p31 = scmp.eq.s32.totalorder %s30, 0
      %s33 = sadd.s32 %s32, 1
      %s34 = scalar_select %p31, %s32, %s33
      %p37 = pneg %p31
      %p38 = scmp.eq.s32.totalorder %s22, 1
      %p39 = por %p37, %p38
      %p40 = scmp.ne.s32.totalorder %s32, %s35
      %p41 = scmp.eq.s32.totalorder %s22, 0
      %p42 = por %p40, %p41
      %p43 = scmp.ne.s32.totalorder %s32, %s35
      %p44 = scmp.eq.s32.totalorder %s27, 1
      %p45 = por %p43, %p44
      %p46 = scmp.ne.s32.totalorder %s35, %s36
      %p47 = scmp.eq.s32.totalorder %s27, 0
      %p48 = por %p46, %p47
      %p49 = scmp.ne.s32.totalorder %s35, %s36
      %p50 = scmp.eq.s32.totalorder %s28, 1
      %p51 = por %p49, %p50
      %p53 = scmp.ne.s32.totalorder %s36, %s52
      %p54 = scmp.eq.s32.totalorder %s28, 0
      %p55 = por %p53, %p54
      %s56 = ssub.s32 %s22, %s29
      %p57 = scmp.eq.s32.totalorder %s56, 0
      %s59 = sadd.s32 %s58, 1
      %s60 = scalar_select %p57, %s58, %s59
      %p63 = pneg %p57
      %p64 = scmp.eq.s32.totalorder %s22, 1
      %p65 = por %p63, %p64
      %p66 = scmp.ne.s32.totalorder %s58, %s61
      %p67 = scmp.eq.s32.totalorder %s22, 0
      %p68 = por %p66, %p67
      %p69 = scmp.ne.s32.totalorder %s58, %s61
      %p70 = scmp.eq.s32.totalorder %s27, 1
      %p71 = por %p69, %p70
      %p72 = scmp.ne.s32.totalorder %s61, %s62
      %p73 = scmp.eq.s32.totalorder %s27, 0
      %p74 = por %p72, %p73
      %p75 = scmp.ne.s32.totalorder %s61, %s62
      %p76 = scmp.eq.s32.totalorder %s28, 1
      %p77 = por %p75, %p76
      %p79 = scmp.ne.s32.totalorder %s62, %s78
      %p80 = scmp.eq.s32.totalorder %s28, 0
      %p81 = por %p79, %p80
      %s82 = ssub.s32 %s22, %s29
      %p83 = scmp.eq.s32.totalorder %s82, 0
      %s85 = sadd.s32 %s84, 1
      %s86 = scalar_select %p83, %s84, %s85
      %p89 = pneg %p83
      %p90 = scmp.eq.s32.totalorder %s22, 1
      %p91 = por %p89, %p90
      %p92 = scmp.ne.s32.totalorder %s84, %s87
      %p93 = scmp.eq.s32.totalorder %s22, 0
      %p94 = por %p92, %p93
      %p95 = scmp.ne.s32.totalorder %s84, %s87
      %p96 = scmp.eq.s32.totalorder %s27, 1
      %p97 = por %p95, %p96
      %p98 = scmp.ne.s32.totalorder %s87, %s88
      %p99 = scmp.eq.s32.totalorder %s27, 0
      %p100 = por %p98, %p99
      %p101 = scmp.ne.s32.totalorder %s87, %s88
      %p102 = scmp.eq.s32.totalorder %s28, 1
      %p103 = por %p101, %p102
      %p105 = scmp.ne.s32.totalorder %s88, %s104
      %p106 = scmp.eq.s32.totalorder %s28, 0
      %p107 = por %p105, %p106
      %s108 = ssub.s32 %s22, %s29
      %p109 = scmp.eq.s32.totalorder %s108, 0
      %s111 = sadd.s32 %s110, 1
      %s112 = scalar_select %p109, %s110, %s111
      %p115 = pneg %p109
      %p116 = scmp.eq.s32.totalorder %s22, 1
      %p117 = por %p115, %p116
      %p118 = scmp.ne.s32.totalorder %s110, %s113
      %p119 = scmp.eq.s32.totalorder %s22, 0
      %p120 = por %p118, %p119
      %p121 = scmp.ne.s32.totalorder %s110, %s113
      %p122 = scmp.eq.s32.totalorder %s27, 1
      %p123 = por %p121, %p122
      %p124 = scmp.ne.s32.totalorder %s113, %s114
      %p125 = scmp.eq.s32.totalorder %s27, 0
      %p126 = por %p124, %p125
      %p127 = scmp.ne.s32.totalorder %s113, %s114
      %p128 = scmp.eq.s32.totalorder %s28, 1
      %p129 = por %p127, %p128
      %p131 = scmp.ne.s32.totalorder %s114, %s130
      %p132 = scmp.eq.s32.totalorder %s28, 0
      %p133 = por %p131, %p132
      %p134 = scmp.le.s32.totalorder 1, %s22
      %p135 = scmp.lt.s32.totalorder %s22, 3
      %p136 = pnand %p134, %p135
      %p137 = pneg %p136
      // Predicated region
      $region9: #{tpu_custom_call.1} parent=5 // pred_check
        _
      $region10: #{tpu_custom_call.1} parent=5 // pred_check_branch
        %139 = sbr.rel (%p136) target = $region12
      $region11: #{tpu_custom_call.1} parent=5 // pred_region
        %s140 = ssub.s32 %s22, 1
      $region12: #{tpu_custom_call.1} parent=5 // pred_fallthru
        _
      %p141 = scmp.lt.s32.totalorder %s22, 2
      // Predicated region
      $region13: #{tpu_custom_call.1} parent=5 // pred_check
        %p142 = pneg %p141
      $region14: #{tpu_custom_call.1} parent=5 // pred_check_branch
        %144 = sbr.rel (%p142) target = $region16
      $region15: #{tpu_custom_call.1} parent=5 // pred_region
        // Predicated region
        $region17: #{tpu_custom_call.1} parent=15 // pred_check
          %p145 = pneg %p42
        $region18: #{tpu_custom_call.1} parent=15 // pred_check_branch
          %147 = sbr.rel (%p145) target = $region20
        $region19: #{tpu_custom_call.1} parent=15 // pred_region
          %s148 = sand.u32 %s32, 1
          %s149 = scalar_lea.sflag [#allocation3], %s148
          %s150 = sand.u32 %s32, 1
          %s151 = smul.addr %s150, 64
          %s152 = scalar_lea.vmem [#allocation2], %s151
          %s153 = smul.u32 4, %s22
          %s155 = ssub.s32 1024, 1024
          %156 = vsyncadd %s149, %s155
          %s157 = smul.addr %s153, 2
          %s158 = smul.addr %s157, 128
          %s159 = scalar_lea.hbm %s0, %s158
          %s160 = sshll.u32 %s152, 4
          %s161 = int_to_ptr.vmem [resolvable:$true] %s160
          %166 = dma.hbm_to_vmem [thread:$0]  %s159, 1024, %s161, %s149, 128, 128, 8
        $region20: #{tpu_custom_call.1} parent=15 // pred_fallthru
          _
        // Predicated region
        $region21: #{tpu_custom_call.1} parent=15 // pred_check
          %p167 = pneg %p68
        $region22: #{tpu_custom_call.1} parent=15 // pred_check_branch
          %169 = sbr.rel (%p167) target = $region24
        $region23: #{tpu_custom_call.1} parent=15 // pred_region
          %s170 = sand.u32 %s58, 1
          %s171 = scalar_lea.sflag [#allocation6], %s170
          %s172 = sand.u32 %s58, 1
          %s173 = smul.addr %s172, 64
          %s174 = scalar_lea.vmem [#allocation5], %s173
          %s175 = smul.u32 4, %s22
          %s177 = ssub.s32 1024, 1024
          %178 = vsyncadd %s171, %s177
          %s179 = smul.addr %s175, 2
          %s180 = smul.addr %s179, 128
          %s181 = scalar_lea.hbm %s1, %s180
          %s182 = sshll.u32 %s174, 4
          %s183 = int_to_ptr.vmem [resolvable:$true] %s182
          %188 = dma.hbm_to_vmem [thread:$0]  %s181, 1024, %s183, %s171, 128, 128, 8
        $region24: #{tpu_custom_call.1} parent=15 // pred_fallthru
          _
      $region16: #{tpu_custom_call.1} parent=5 // pred_fallthru
        _
      %p189 = scmp.le.s32.totalorder 1, %s22
      %p190 = scmp.lt.s32.totalorder %s22, 3
      %p191 = pnand %p189, %p190
      %p192 = pneg %p191
      // Predicated region
      $region25: #{tpu_custom_call.1} parent=5 // pred_check
        _
      $region26: #{tpu_custom_call.1} parent=5 // pred_check_branch
        %194 = sbr.rel (%p191) target = $region28
      $region27: #{tpu_custom_call.1} parent=5 // pred_region
        %s195 = ssub.s32 %s22, 1
        %s196 = sand.u32 %s35, 1
        %s197 = scalar_lea.sflag [#allocation3], %s196
        %s198 = sand.u32 %s35, 1
        %s199 = smul.addr %s198, 64
        %s200 = scalar_lea.vmem [#allocation2], %s199
        // Predicated region
        $region29: #{tpu_custom_call.1} parent=27 // pred_check
          %p201 = pneg %p48
        $region30: #{tpu_custom_call.1} parent=27 // pred_check_branch
          %203 = sbr.rel (%p201) target = $region32
        $region31: #{tpu_custom_call.1} parent=27 // pred_region
          %204 = dma.done %s197, 1024
        $region32: #{tpu_custom_call.1} parent=27 // pred_fallthru
          _
        %s205 = sand.u32 %s61, 1
        %s206 = scalar_lea.sflag [#allocation6], %s205
        %s207 = sand.u32 %s61, 1
        %s208 = smul.addr %s207, 64
        %s209 = scalar_lea.vmem [#allocation5], %s208
        // Predicated region
        $region33: #{tpu_custom_call.1} parent=27 // pred_check
          %p210 = pneg %p74
        $region34: #{tpu_custom_call.1} parent=27 // pred_check_branch
          %212 = sbr.rel (%p210) target = $region36
        $region35: #{tpu_custom_call.1} parent=27 // pred_region
          %213 = dma.done %s206, 1024
        $region36: #{tpu_custom_call.1} parent=27 // pred_fallthru
          _
        %s214 = sand.u32 %s35, 1
        %s215 = scalar_lea.sflag [#allocation3], %s214
        %s216 = sand.u32 %s35, 1
        %s217 = smul.addr %s216, 64
        %s218 = scalar_lea.vmem [#allocation2], %s217
        %p219 = pneg %p48
        %p220 = pneg %p45
        %s221 = sand.u32 %s61, 1
        %s222 = scalar_lea.sflag [#allocation6], %s221
        %s223 = sand.u32 %s61, 1
        %s224 = smul.addr %s223, 64
        %s225 = scalar_lea.vmem [#allocation5], %s224
        %p226 = pneg %p74
        %p227 = pneg %p71
        %p228 = pneg %p100
        %p229 = pneg %p97
        %s230 = sand.u32 %s87, 1
        %s231 = scalar_lea.sflag [#allocation4], %s230
        %s232 = sand.u32 %s87, 1
        %s233 = scalar_lea.vmem [#allocation7], %s232
        %p234 = pneg %p126
        %p235 = pneg %p123
        %s236 = sand.u32 %s113, 1
        %s237 = scalar_lea.sflag [#allocation9], %s236
        %s238 = sand.u32 %s113, 1
        %s239 = scalar_lea.vmem [#allocation8], %s238
        %s240 = smul.u32 4, %s27
        %s241 = smul.u32 4, %s27
        %v242 = vld [vmem:[%s200] sm:$0xff]
        %v243 = vld [vmem:[%s200 + $0x8] sm:$0xff]
        %v244 = vld [vmem:[%s200 + $0x10] sm:$0xff]
        %v245 = vld [vmem:[%s200 + $0x18] sm:$0xff]
        %v246 = vld [vmem:[%s200 + $0x20] sm:$0xff]
        %v247 = vld [vmem:[%s200 + $0x28] sm:$0xff]
        %v248 = vld [vmem:[%s200 + $0x30] sm:$0xff]
        %v249 = vld [vmem:[%s200 + $0x38] sm:$0xff]
        %v250 = vld [vmem:[%s209] sm:$0xff]
        %v251 = vld [vmem:[%s209 + $0x8] sm:$0xff]
        %v252 = vld [vmem:[%s209 + $0x10] sm:$0xff]
        %v253 = vld [vmem:[%s209 + $0x18] sm:$0xff]
        %v254 = vld [vmem:[%s209 + $0x20] sm:$0xff]
        %v255 = vld [vmem:[%s209 + $0x28] sm:$0xff]
        %v256 = vld [vmem:[%s209 + $0x30] sm:$0xff]
        %v257 = vld [vmem:[%s209 + $0x38] sm:$0xff]
        %v258 = vlaneseq
        %v259 = vshrl.u32 %v258, 7
        %v260 = vadd.s32 %v259, 8
        %v261 = vlaneseq
        %v262 = vand.u32 %v261, 127
        %v263 = vsub.s32 %v262, %v259
        %v264 = vsub.s32 %v262, %v260
        %v265 = vadd.s32 %v263, 5
        %v266 = vadd.s32 %v264, 5
        %vm267 = vcmp.eq.s32.totalorder %v265, 0
        %vm268 = vcmp.eq.s32.totalorder %v266, 0
        %v269 = vsel %vm267, 0.0010283801, 0.0
        %v270 = vsel %vm268, 0.0010283801, 0.0
        %v271 = vadd.f32 %v269, 0.0
        %v272 = vadd.f32 %v270, 0.0
        %vm273 = vcmp.eq.s32.totalorder %v265, 1
        %vm274 = vcmp.eq.s32.totalorder %v266, 1
        %v275 = vsel %vm273, 0.007598758, 0.0
        %v276 = vsel %vm274, 0.007598758, 0.0
        %v277 = vadd.f32 %v271, %v275
        %v278 = vadd.f32 %v272, %v276
        %vm279 = vcmp.eq.s32.totalorder %v265, 2
        %vm280 = vcmp.eq.s32.totalorder %v266, 2
        %v281 = vsel %vm279, 0.036000773, 0.0
        %v282 = vsel %vm280, 0.036000773, 0.0
        %v283 = vadd.f32 %v277, %v281
        %v284 = vadd.f32 %v278, %v282
        %vm285 = vcmp.eq.s32.totalorder %v265, 3
        %vm286 = vcmp.eq.s32.totalorder %v266, 3
        %v287 = vsel %vm285, 0.10936069, 0.0
        %v288 = vsel %vm286, 0.10936069, 0.0
        %v289 = vadd.f32 %v283, %v287
        %v290 = vadd.f32 %v284, %v288
        %vm291 = vcmp.eq.s32.totalorder %v265, 4
        %vm292 = vcmp.eq.s32.totalorder %v266, 4
        %v293 = vsel %vm291, 0.21300554, 0.0
        %v294 = vsel %vm292, 0.21300554, 0.0
        %v295 = vadd.f32 %v289, %v293
        %v296 = vadd.f32 %v290, %v294
        %vm297 = vcmp.eq.s32.totalorder %v265, 5
        %vm298 = vcmp.eq.s32.totalorder %v266, 5
        %v299 = vsel %vm297, 0.26601171, 0.0
        %v300 = vsel %vm298, 0.26601171, 0.0
        %v301 = vadd.f32 %v295, %v299
        %v302 = vadd.f32 %v296, %v300
        %vm303 = vcmp.eq.s32.totalorder %v265, 6
        %vm304 = vcmp.eq.s32.totalorder %v266, 6
        %v305 = vsel %vm303, 0.21300554, 0.0
        %v306 = vsel %vm304, 0.21300554, 0.0
        %v307 = vadd.f32 %v301, %v305
        %v308 = vadd.f32 %v302, %v306
        %vm309 = vcmp.eq.s32.totalorder %v265, 7
        %vm310 = vcmp.eq.s32.totalorder %v266, 7
        %v311 = vsel %vm309, 0.10936069, 0.0
        %v312 = vsel %vm310, 0.10936069, 0.0
        %v313 = vadd.f32 %v307, %v311
        %v314 = vadd.f32 %v308, %v312
        %vm315 = vcmp.eq.s32.totalorder %v265, 8
        %vm316 = vcmp.eq.s32.totalorder %v266, 8
        %v317 = vsel %vm315, 0.036000773, 0.0
        %v318 = vsel %vm316, 0.036000773, 0.0
        %v319 = vadd.f32 %v313, %v317
        %v320 = vadd.f32 %v314, %v318
        %vm321 = vcmp.eq.s32.totalorder %v265, 9
        %vm322 = vcmp.eq.s32.totalorder %v266, 9
        %v323 = vsel %vm321, 0.007598758, 0.0
        %v324 = vsel %vm322, 0.007598758, 0.0
        %v325 = vadd.f32 %v319, %v323
        %v326 = vadd.f32 %v320, %v324
        %vm327 = vcmp.eq.s32.totalorder %v265, 10
        %vm328 = vcmp.eq.s32.totalorder %v266, 10
        %v329 = vsel %vm327, 0.0010283801, 0.0
        %v330 = vsel %vm328, 0.0010283801, 0.0
        %v331 = vadd.f32 %v325, %v329
        %v332 = vadd.f32 %v326, %v330
        %vm333 = vcmask 130048
        %v335 = vsel %vm333, %v242, 0
        %v338 = vsel %vm333, %v243, 0
        %v341 = vsel %vm333, %v244, 0
        %v344 = vsel %vm333, %v245, 0
        %v347 = vsel %vm333, %v246, 0
        %v350 = vsel %vm333, %v247, 0
        %v353 = vsel %vm333, %v248, 0
        %v356 = vsel %vm333, %v249, 0
        %358 = vmatprep.subr.mxu0 0.0
        %359 = vmatpush1.msra.mxu0 %v331
        %360 = vmatprep.subr.mxu0 0.0
        %361 = vmatpush1.msra.mxu0 %v332
        %362 = vmatprep.subr.mxu0 0.0
        %363 = vmatpush1.msra.mxu0 0.0
        %364 = vmatprep.subr.mxu0 0.0
        %365 = vmatpush1.msra.mxu0 0.0
        %366 = vmatprep.subr.mxu0 0.0
        %367 = vmatpush1.msra.mxu0 0.0
        %368 = vmatprep.subr.mxu0 0.0
        %369 = vmatpush1.msra.mxu0 0.0
        %370 = vmatprep.subr.mxu0 0.0
        %371 = vmatpush1.msra.mxu0 0.0
        %372 = vmatprep.subr.mxu0 0.0
        %373 = vmatpush1.msra.mxu0 0.0
        %374 = vmatprep.subr.mxu0 0.0
        %375 = vmatpush1.msra.mxu0 0.0
        %376 = vmatprep.subr.mxu0 0.0
        %377 = vmatpush1.msra.mxu0 0.0
        %378 = vmatprep.subr.mxu0 0.0
        %379 = vmatpush1.msra.mxu0 0.0
        %380 = vmatprep.subr.mxu0 0.0
        %381 = vmatpush1.msra.mxu0 0.0
        %382 = vmatprep.subr.mxu0 0.0
        %383 = vmatpush1.msra.mxu0 0.0
        %384 = vmatprep.subr.mxu0 0.0
        %385 = vmatpush1.msra.mxu0 0.0
        %386 = vmatprep.subr.mxu0 0.0
        %387 = vmatpush1.msra.mxu0 0.0
        %388 = vmatprep.subr.mxu0 0.0
        %389 = vmatpush1.msra.mxu0 0.0
        %390 = vmatprep.subr.mxu0 0.0
        %391 = vmatpush1.msra.mxu0 0.0
        %392 = vmatprep.subr.mxu0 0.0
        %393 = vmatpush1.msra.mxu0 0.0
        %394 = vmatprep.subr.mxu0 0.0
        %395 = vmatpush1.msra.mxu0 0.0
        %396 = vmatprep.subr.mxu0 0.0
        %397 = vmatpush1.msra.mxu0 0.0
        %398 = vmatprep.subr.mxu0 0.0
        %399 = vmatpush1.msra.mxu0 0.0
        %400 = vmatprep.subr.mxu0 0.0
        %401 = vmatpush1.msra.mxu0 0.0
        %402 = vmatprep.subr.mxu0 0.0
        %403 = vmatpush1.msra.mxu0 0.0
        %404 = vmatprep.subr.mxu0 0.0
        %405 = vmatpush1.msra.mxu0 0.0
        %406 = vmatprep.subr.mxu0 0.0
        %407 = vmatpush1.msra.mxu0 0.0
        %408 = vmatprep.subr.mxu0 0.0
        %409 = vmatpush1.msra.mxu0 0.0
        %410 = vmatprep.subr.mxu0 0.0
        %411 = vmatpush1.msra.mxu0 0.0
        %412 = vmatprep.subr.mxu0 0.0
        %413 = vmatpush1.msra.mxu0 0.0
        %414 = vmatprep.subr.mxu0 0.0
        %415 = vmatpush1.msra.mxu0 0.0
        %416 = vmatprep.subr.mxu0 0.0
        %417 = vmatpush1.msra.mxu0 0.0
        %418 = vmatprep.subr.mxu0 0.0
        %419 = vmatpush1.msra.mxu0 0.0
        %420 = vmatprep.subr.mxu0 0.0
        %421 = vmatpush1.msra.mxu0 0.0
        %422 = vmatprep.mubr.f32.mxu0 0.0
        %423 = vmatmul.mubr.f32.gmra.mrb[0].mxu0 %v335
        %v424 = vpop.f32.mrb[0].mxu0
        %v425 = vadd.f32 0.0, %v424
        %v426 = vpop.f32.mrb[0].mxu0
        %427 = vmatprep.mubr.f32.mxu0 0.0
        %428 = vmatmul.mubr.f32.gmra.mrb[0].mxu0 %v338
        %v429 = vpop.f32.mrb[0].mxu0
        %v430 = vadd.f32 0.0, %v429
        %v431 = vpop.f32.mrb[0].mxu0
        %432 = vmatprep.mubr.f32.mxu0 0.0
        %433 = vmatmul.mubr.f32.gmra.mrb[0].mxu0 %v341
        %v434 = vpop.f32.mrb[0].mxu0
        %v435 = vadd.f32 0.0, %v434
        %v436 = vpop.f32.mrb[0].mxu0
        %437 = vmatprep.mubr.f32.mxu0 0.0
        %438 = vmatmul.mubr.f32.gmra.mrb[0].mxu0 %v344
        %v439 = vpop.f32.mrb[0].mxu0
        %v440 = vadd.f32 0.0, %v439
        %v441 = vpop.f32.mrb[0].mxu0
        %442 = vmatprep.mubr.f32.mxu0 0.0
        %443 = vmatmul.mubr.f32.gmra.mrb[0].mxu0 %v347
        %v444 = vpop.f32.mrb[0].mxu0
        %v445 = vadd.f32 0.0, %v444
        %v446 = vpop.f32.mrb[0].mxu0
        %447 = vmatprep.mubr.f32.mxu0 0.0
        %448 = vmatmul.mubr.f32.gmra.mrb[0].mxu0 %v350
        %v449 = vpop.f32.mrb[0].mxu0
        %v450 = vadd.f32 0.0, %v449
        %v451 = vpop.f32.mrb[0].mxu0
        %452 = vmatprep.mubr.f32.mxu0 0.0
        %453 = vmatmul.mubr.f32.gmra.mrb[0].mxu0 %v353
        %v454 = vpop.f32.mrb[0].mxu0
        %v455 = vadd.f32 0.0, %v454
        %v456 = vpop.f32.mrb[0].mxu0
        %457 = vmatprep.mubr.f32.mxu0 0.0
        %458 = vmatmul.mubr.f32.gmra.mrb[0].mxu0 %v356
        %v459 = vpop.f32.mrb[0].mxu0
        %v460 = vadd.f32 0.0, %v459
        %v461 = vpop.f32.mrb[0].mxu0
        %462 = vdwg.mxu0
        %465 = vrot.lane.b32.xlu0 %v435, 16
        %v466 = vpop.permute.xlu0 %465
        %467 = vrot.lane.b32.xlu0 %v440, 16
        %v468 = vpop.permute.xlu0 %467
        %473 = vrot.lane.b32.xlu0 %v445, 32
        %v474 = vpop.permute.xlu0 %473
        %475 = vrot.lane.b32.xlu0 %v450, 32
        %v476 = vpop.permute.xlu0 %475
        %481 = vrot.lane.b32.xlu0 %v455, 48
        %v482 = vpop.permute.xlu0 %481
        %483 = vrot.lane.b32.xlu0 %v460, 48
        %v484 = vpop.permute.xlu0 %483
        %v487 = vsel %vm333, %v425, %v466
        %v488 = vsel %vm333, %v430, %v468
        %vm489 = vcmask 261120
        %v490 = vsel %vm489, %v487, %v474
        %v491 = vsel %vm489, %v488, %v476
        %vm492 = vcmask 392192
        %v493 = vsel %vm492, %v490, %v482
        %v494 = vsel %vm492, %v491, %v484
        %v496 = vsel %vm333, %v331, 0
        %v499 = vsel %vm333, %v332, 0
        %501 = vmatprep.subr.mxu0 0.0
        %502 = vmatpush1.msra.mxu0 %v493
        %503 = vmatprep.subr.mxu0 0.0
        %504 = vmatpush1.msra.mxu0 %v494
        %505 = vmatprep.subr.mxu0 0.0
        %506 = vmatpush1.msra.mxu0 0.0
        %507 = vmatprep.subr.mxu0 0.0
        %508 = vmatpush1.msra.mxu0 0.0
        %509 = vmatprep.subr.mxu0 0.0
        %510 = vmatpush1.msra.mxu0 0.0
        %511 = vmatprep.subr.mxu0 0.0
        %512 = vmatpush1.msra.mxu0 0.0
        %513 = vmatprep.subr.mxu0 0.0
        %514 = vmatpush1.msra.mxu0 0.0
        %515 = vmatprep.subr.mxu0 0.0
        %516 = vmatpush1.msra.mxu0 0.0
        %517 = vmatprep.subr.mxu0 0.0
        %518 = vmatpush1.msra.mxu0 0.0
        %519 = vmatprep.subr.mxu0 0.0
        %520 = vmatpush1.msra.mxu0 0.0
        %521 = vmatprep.subr.mxu0 0.0
        %522 = vmatpush1.msra.mxu0 0.0
        %523 = vmatprep.subr.mxu0 0.0
        %524 = vmatpush1.msra.mxu0 0.0
        %525 = vmatprep.subr.mxu0 0.0
        %526 = vmatpush1.msra.mxu0 0.0
        %527 = vmatprep.subr.mxu0 0.0
        %528 = vmatpush1.msra.mxu0 0.0
        %529 = vmatprep.subr.mxu0 0.0
        %530 = vmatpush1.msra.mxu0 0.0
        %531 = vmatprep.subr.mxu0 0.0
        %532 = vmatpush1.msra.mxu0 0.0
        %533 = vmatprep.subr.mxu0 0.0
        %534 = vmatpush1.msra.mxu0 0.0
        %535 = vmatprep.subr.mxu0 0.0
        %536 = vmatpush1.msra.mxu0 0.0
        %537 = vmatprep.subr.mxu0 0.0
        %538 = vmatpush1.msra.mxu0 0.0
        %539 = vmatprep.subr.mxu0 0.0
        %540 = vmatpush1.msra.mxu0 0.0
        %541 = vmatprep.subr.mxu0 0.0
        %542 = vmatpush1.msra.mxu0 0.0
        %543 = vmatprep.subr.mxu0 0.0
        %544 = vmatpush1.msra.mxu0 0.0
        %545 = vmatprep.subr.mxu0 0.0
        %546 = vmatpush1.msra.mxu0 0.0
        %547 = vmatprep.subr.mxu0 0.0
        %548 = vmatpush1.msra.mxu0 0.0
        %549 = vmatprep.subr.mxu0 0.0
        %550 = vmatpush1.msra.mxu0 0.0
        %551 = vmatprep.subr.mxu0 0.0
        %552 = vmatpush1.msra.mxu0 0.0
        %553 = vmatprep.subr.mxu0 0.0
        %554 = vmatpush1.msra.mxu0 0.0
        %555 = vmatprep.subr.mxu0 0.0
        %556 = vmatpush1.msra.mxu0 0.0
        %557 = vmatprep.subr.mxu0 0.0
        %558 = vmatpush1.msra.mxu0 0.0
        %559 = vmatprep.subr.mxu0 0.0
        %560 = vmatpush1.msra.mxu0 0.0
        %561 = vmatprep.subr.mxu0 0.0
        %562 = vmatpush1.msra.mxu0 0.0
        %563 = vmatprep.subr.mxu0 0.0
        %564 = vmatpush1.msra.mxu0 0.0
        %565 = vmatprep.mubr.f32.mxu0 0.0
        %566 = vmatmul.mubr.f32.gmra.mrb[0].mxu0 %v496
        %v567 = vpop.f32.mrb[0].mxu0
        %v568 = vadd.f32 0.0, %v567
        %v569 = vpop.f32.mrb[0].mxu0
        %570 = vmatprep.mubr.f32.mxu0 0.0
        %571 = vmatmul.mubr.f32.gmra.mrb[0].mxu0 %v499
        %v572 = vpop.f32.mrb[0].mxu0
        %v573 = vadd.f32 0.0, %v572
        %v574 = vpop.f32.mrb[0].mxu0
        %575 = vdwg.mxu0
        %v577 = vsel %vm333, %v250, 0
        %v580 = vsel %vm333, %v251, 0
        %v583 = vsel %vm333, %v252, 0
        %v586 = vsel %vm333, %v253, 0
        %v589 = vsel %vm333, %v254, 0
        %v592 = vsel %vm333, %v255, 0
        %v595 = vsel %vm333, %v256, 0
        %v598 = vsel %vm333, %v257, 0
        %600 = vmatprep.subr.mxu0 0.0
        %601 = vmatpush1.msra.mxu0 %v331
        %602 = vmatprep.subr.mxu0 0.0
        %603 = vmatpush1.msra.mxu0 %v332
        %604 = vmatprep.subr.mxu0 0.0
        %605 = vmatpush1.msra.mxu0 0.0
        %606 = vmatprep.subr.mxu0 0.0
        %607 = vmatpush1.msra.mxu0 0.0
        %608 = vmatprep.subr.mxu0 0.0
        %609 = vmatpush1.msra.mxu0 0.0
        %610 = vmatprep.subr.mxu0 0.0
        %611 = vmatpush1.msra.mxu0 0.0
        %612 = vmatprep.subr.mxu0 0.0
        %613 = vmatpush1.msra.mxu0 0.0
        %614 = vmatprep.subr.mxu0 0.0
        %615 = vmatpush1.msra.mxu0 0.0
        %616 = vmatprep.subr.mxu0 0.0
        %617 = vmatpush1.msra.mxu0 0.0
        %618 = vmatprep.subr.mxu0 0.0
        %619 = vmatpush1.msra.mxu0 0.0
        %620 = vmatprep.subr.mxu0 0.0
        %621 = vmatpush1.msra.mxu0 0.0
        %622 = vmatprep.subr.mxu0 0.0
        %623 = vmatpush1.msra.mxu0 0.0
        %624 = vmatprep.subr.mxu0 0.0
        %625 = vmatpush1.msra.mxu0 0.0
        %626 = vmatprep.subr.mxu0 0.0
        %627 = vmatpush1.msra.mxu0 0.0
        %628 = vmatprep.subr.mxu0 0.0
        %629 = vmatpush1.msra.mxu0 0.0
        %630 = vmatprep.subr.mxu0 0.0
        %631 = vmatpush1.msra.mxu0 0.0
        %632 = vmatprep.subr.mxu0 0.0
        %633 = vmatpush1.msra.mxu0 0.0
        %634 = vmatprep.subr.mxu0 0.0
        %635 = vmatpush1.msra.mxu0 0.0
        %636 = vmatprep.subr.mxu0 0.0
        %637 = vmatpush1.msra.mxu0 0.0
        %638 = vmatprep.subr.mxu0 0.0
        %639 = vmatpush1.msra.mxu0 0.0
        %640 = vmatprep.subr.mxu0 0.0
        %641 = vmatpush1.msra.mxu0 0.0
        %642 = vmatprep.subr.mxu0 0.0
        %643 = vmatpush1.msra.mxu0 0.0
        %644 = vmatprep.subr.mxu0 0.0
        %645 = vmatpush1.msra.mxu0 0.0
        %646 = vmatprep.subr.mxu0 0.0
        %647 = vmatpush1.msra.mxu0 0.0
        %648 = vmatprep.subr.mxu0 0.0
        %649 = vmatpush1.msra.mxu0 0.0
        %650 = vmatprep.subr.mxu0 0.0
        %651 = vmatpush1.msra.mxu0 0.0
        %652 = vmatprep.subr.mxu0 0.0
        %653 = vmatpush1.msra.mxu0 0.0
        %654 = vmatprep.subr.mxu0 0.0
        %655 = vmatpush1.msra.mxu0 0.0
        %656 = vmatprep.subr.mxu0 0.0
        %657 = vmatpush1.msra.mxu0 0.0
        %658 = vmatprep.subr.mxu0 0.0
        %659 = vmatpush1.msra.mxu0 0.0
        %660 = vmatprep.subr.mxu0 0.0
        %661 = vmatpush1.msra.mxu0 0.0
        %662 = vmatprep.subr.mxu0 0.0
        %663 = vmatpush1.msra.mxu0 0.0
        %664 = vmatprep.mubr.f32.mxu0 0.0
        %665 = vmatmul.mubr.f32.gmra.mrb[0].mxu0 %v577
        %v666 = vpop.f32.mrb[0].mxu0
        %v667 = vadd.f32 0.0, %v666
        %v668 = vpop.f32.mrb[0].mxu0
        %669 = vmatprep.mubr.f32.mxu0 0.0
        %670 = vmatmul.mubr.f32.gmra.mrb[0].mxu0 %v580
        %v671 = vpop.f32.mrb[0].mxu0
        %v672 = vadd.f32 0.0, %v671
        %v673 = vpop.f32.mrb[0].mxu0
        %674 = vmatprep.mubr.f32.mxu0 0.0
        %675 = vmatmul.mubr.f32.gmra.mrb[0].mxu0 %v583
        %v676 = vpop.f32.mrb[0].mxu0
        %v677 = vadd.f32 0.0, %v676
        %v678 = vpop.f32.mrb[0].mxu0
        %679 = vmatprep.mubr.f32.mxu0 0.0
        %680 = vmatmul.mubr.f32.gmra.mrb[0].mxu0 %v586
        %v681 = vpop.f32.mrb[0].mxu0
        %v682 = vadd.f32 0.0, %v681
        %v683 = vpop.f32.mrb[0].mxu0
        %684 = vmatprep.mubr.f32.mxu0 0.0
        %685 = vmatmul.mubr.f32.gmra.mrb[0].mxu0 %v589
        %v686 = vpop.f32.mrb[0].mxu0
        %v687 = vadd.f32 0.0, %v686
        %v688 = vpop.f32.mrb[0].mxu0
        %689 = vmatprep.mubr.f32.mxu0 0.0
        %690 = vmatmul.mubr.f32.gmra.mrb[0].mxu0 %v592
        %v691 = vpop.f32.mrb[0].mxu0
        %v692 = vadd.f32 0.0, %v691
        %v693 = vpop.f32.mrb[0].mxu0
        %694 = vmatprep.mubr.f32.mxu0 0.0
        %695 = vmatmul.mubr.f32.gmra.mrb[0].mxu0 %v595
        %v696 = vpop.f32.mrb[0].mxu0
        %v697 = vadd.f32 0.0, %v696
        %v698 = vpop.f32.mrb[0].mxu0
        %699 = vmatprep.mubr.f32.mxu0 0.0
        %700 = vmatmul.mubr.f32.gmra.mrb[0].mxu0 %v598
        %v701 = vpop.f32.mrb[0].mxu0
        %v702 = vadd.f32 0.0, %v701
        %v703 = vpop.f32.mrb[0].mxu0
        %704 = vdwg.mxu0
        %707 = vrot.lane.b32.xlu0 %v677, 16
        %v708 = vpop.permute.xlu0 %707
        %709 = vrot.lane.b32.xlu0 %v682, 16
        %v710 = vpop.permute.xlu0 %709
        %715 = vrot.lane.b32.xlu0 %v687, 32
        %v716 = vpop.permute.xlu0 %715
        %717 = vrot.lane.b32.xlu0 %v692, 32
        %v718 = vpop.permute.xlu0 %717
        %723 = vrot.lane.b32.xlu0 %v697, 48
        %v724 = vpop.permute.xlu0 %723
        %725 = vrot.lane.b32.xlu0 %v702, 48
        %v726 = vpop.permute.xlu0 %725
        %v729 = vsel %vm333, %v667, %v708
        %v730 = vsel %vm333, %v672, %v710
        %v731 = vsel %vm489, %v729, %v716
        %v732 = vsel %vm489, %v730, %v718
        %v733 = vsel %vm492, %v731, %v724
        %v734 = vsel %vm492, %v732, %v726
        %735 = vmatprep.subr.mxu0 0.0
        %736 = vmatpush1.msra.mxu0 %v733
        %737 = vmatprep.subr.mxu0 0.0
        %738 = vmatpush1.msra.mxu0 %v734
        %739 = vmatprep.subr.mxu0 0.0
        %740 = vmatpush1.msra.mxu0 0.0
        %741 = vmatprep.subr.mxu0 0.0
        %742 = vmatpush1.msra.mxu0 0.0
        %743 = vmatprep.subr.mxu0 0.0
        %744 = vmatpush1.msra.mxu0 0.0
        %745 = vmatprep.subr.mxu0 0.0
        %746 = vmatpush1.msra.mxu0 0.0
        %747 = vmatprep.subr.mxu0 0.0
        %748 = vmatpush1.msra.mxu0 0.0
        %749 = vmatprep.subr.mxu0 0.0
        %750 = vmatpush1.msra.mxu0 0.0
        %751 = vmatprep.subr.mxu0 0.0
        %752 = vmatpush1.msra.mxu0 0.0
        %753 = vmatprep.subr.mxu0 0.0
        %754 = vmatpush1.msra.mxu0 0.0
        %755 = vmatprep.subr.mxu0 0.0
        %756 = vmatpush1.msra.mxu0 0.0
        %757 = vmatprep.subr.mxu0 0.0
        %758 = vmatpush1.msra.mxu0 0.0
        %759 = vmatprep.subr.mxu0 0.0
        %760 = vmatpush1.msra.mxu0 0.0
        %761 = vmatprep.subr.mxu0 0.0
        %762 = vmatpush1.msra.mxu0 0.0
        %763 = vmatprep.subr.mxu0 0.0
        %764 = vmatpush1.msra.mxu0 0.0
        %765 = vmatprep.subr.mxu0 0.0
        %766 = vmatpush1.msra.mxu0 0.0
        %767 = vmatprep.subr.mxu0 0.0
        %768 = vmatpush1.msra.mxu0 0.0
        %769 = vmatprep.subr.mxu0 0.0
        %770 = vmatpush1.msra.mxu0 0.0
        %771 = vmatprep.subr.mxu0 0.0
        %772 = vmatpush1.msra.mxu0 0.0
        %773 = vmatprep.subr.mxu0 0.0
        %774 = vmatpush1.msra.mxu0 0.0
        %775 = vmatprep.subr.mxu0 0.0
        %776 = vmatpush1.msra.mxu0 0.0
        %777 = vmatprep.subr.mxu0 0.0
        %778 = vmatpush1.msra.mxu0 0.0
        %779 = vmatprep.subr.mxu0 0.0
        %780 = vmatpush1.msra.mxu0 0.0
        %781 = vmatprep.subr.mxu0 0.0
        %782 = vmatpush1.msra.mxu0 0.0
        %783 = vmatprep.subr.mxu0 0.0
        %784 = vmatpush1.msra.mxu0 0.0
        %785 = vmatprep.subr.mxu0 0.0
        %786 = vmatpush1.msra.mxu0 0.0
        %787 = vmatprep.subr.mxu0 0.0
        %788 = vmatpush1.msra.mxu0 0.0
        %789 = vmatprep.subr.mxu0 0.0
        %790 = vmatpush1.msra.mxu0 0.0
        %791 = vmatprep.subr.mxu0 0.0
        %792 = vmatpush1.msra.mxu0 0.0
        %793 = vmatprep.subr.mxu0 0.0
        %794 = vmatpush1.msra.mxu0 0.0
        %795 = vmatprep.subr.mxu0 0.0
        %796 = vmatpush1.msra.mxu0 0.0
        %797 = vmatprep.subr.mxu0 0.0
        %798 = vmatpush1.msra.mxu0 0.0
        %799 = vmatprep.mubr.f32.mxu0 0.0
        %800 = vmatmul.mubr.f32.gmra.mrb[0].mxu0 %v496
        %v801 = vpop.f32.mrb[0].mxu0
        %v802 = vadd.f32 0.0, %v801
        %v803 = vpop.f32.mrb[0].mxu0
        %804 = vmatprep.mubr.f32.mxu0 0.0
        %805 = vmatmul.mubr.f32.gmra.mrb[0].mxu0 %v499
        %v806 = vpop.f32.mrb[0].mxu0
        %v807 = vadd.f32 0.0, %v806
        %v808 = vpop.f32.mrb[0].mxu0
        %809 = vdwg.mxu0
        %v810 = vmul.f32 %v568, %v568
        %v811 = vmul.f32 %v573, %v573
        %v812 = vmul.f32 %v802, %v802
        %v813 = vmul.f32 %v807, %v807
        %v814 = vmul.f32 %v568, %v802
        %v815 = vmul.f32 %v573, %v807
        %v816 = vmul.f32 %v242, %v242
        %v817 = vmul.f32 %v243, %v243
        %v818 = vmul.f32 %v244, %v244
        %v819 = vmul.f32 %v245, %v245
        %v820 = vmul.f32 %v246, %v246
        %v821 = vmul.f32 %v247, %v247
        %v822 = vmul.f32 %v248, %v248
        %v823 = vmul.f32 %v249, %v249
        %v825 = vsel %vm333, %v816, 0
        %v828 = vsel %vm333, %v817, 0
        %v831 = vsel %vm333, %v818, 0
        %v834 = vsel %vm333, %v819, 0
        %v837 = vsel %vm333, %v820, 0
        %v840 = vsel %vm333, %v821, 0
        %v843 = vsel %vm333, %v822, 0
        %v846 = vsel %vm333, %v823, 0
        %848 = vmatprep.subr.mxu0 0.0
        %849 = vmatpush1.msra.mxu0 %v331
        %850 = vmatprep.subr.mxu0 0.0
        %851 = vmatpush1.msra.mxu0 %v332
        %852 = vmatprep.subr.mxu0 0.0
        %853 = vmatpush1.msra.mxu0 0.0
        %854 = vmatprep.subr.mxu0 0.0
        %855 = vmatpush1.msra.mxu0 0.0
        %856 = vmatprep.subr.mxu0 0.0
        %857 = vmatpush1.msra.mxu0 0.0
        %858 = vmatprep.subr.mxu0 0.0
        %859 = vmatpush1.msra.mxu0 0.0
        %860 = vmatprep.subr.mxu0 0.0
        %861 = vmatpush1.msra.mxu0 0.0
        %862 = vmatprep.subr.mxu0 0.0
        %863 = vmatpush1.msra.mxu0 0.0
        %864 = vmatprep.subr.mxu0 0.0
        %865 = vmatpush1.msra.mxu0 0.0
        %866 = vmatprep.subr.mxu0 0.0
        %867 = vmatpush1.msra.mxu0 0.0
        %868 = vmatprep.subr.mxu0 0.0
        %869 = vmatpush1.msra.mxu0 0.0
        %870 = vmatprep.subr.mxu0 0.0
        %871 = vmatpush1.msra.mxu0 0.0
        %872 = vmatprep.subr.mxu0 0.0
        %873 = vmatpush1.msra.mxu0 0.0
        %874 = vmatprep.subr.mxu0 0.0
        %875 = vmatpush1.msra.mxu0 0.0
        %876 = vmatprep.subr.mxu0 0.0
        %877 = vmatpush1.msra.mxu0 0.0
        %878 = vmatprep.subr.mxu0 0.0
        %879 = vmatpush1.msra.mxu0 0.0
        %880 = vmatprep.subr.mxu0 0.0
        %881 = vmatpush1.msra.mxu0 0.0
        %882 = vmatprep.subr.mxu0 0.0
        %883 = vmatpush1.msra.mxu0 0.0
        %884 = vmatprep.subr.mxu0 0.0
        %885 = vmatpush1.msra.mxu0 0.0
        %886 = vmatprep.subr.mxu0 0.0
        %887 = vmatpush1.msra.mxu0 0.0
        %888 = vmatprep.subr.mxu0 0.0
        %889 = vmatpush1.msra.mxu0 0.0
        %890 = vmatprep.subr.mxu0 0.0
        %891 = vmatpush1.msra.mxu0 0.0
        %892 = vmatprep.subr.mxu0 0.0
        %893 = vmatpush1.msra.mxu0 0.0
        %894 = vmatprep.subr.mxu0 0.0
        %895 = vmatpush1.msra.mxu0 0.0
        %896 = vmatprep.subr.mxu0 0.0
        %897 = vmatpush1.msra.mxu0 0.0
        %898 = vmatprep.subr.mxu0 0.0
        %899 = vmatpush1.msra.mxu0 0.0
        %900 = vmatprep.subr.mxu0 0.0
        %901 = vmatpush1.msra.mxu0 0.0
        %902 = vmatprep.subr.mxu0 0.0
        %903 = vmatpush1.msra.mxu0 0.0
        %904 = vmatprep.subr.mxu0 0.0
        %905 = vmatpush1.msra.mxu0 0.0
        %906 = vmatprep.subr.mxu0 0.0
        %907 = vmatpush1.msra.mxu0 0.0
        %908 = vmatprep.subr.mxu0 0.0
        %909 = vmatpush1.msra.mxu0 0.0
        %910 = vmatprep.subr.mxu0 0.0
        %911 = vmatpush1.msra.mxu0 0.0
        %912 = vmatprep.mubr.f32.mxu0 0.0
        %913 = vmatmul.mubr.f32.gmra.mrb[0].mxu0 %v825
        %v914 = vpop.f32.mrb[0].mxu0
        %v915 = vadd.f32 0.0, %v914
        %v916 = vpop.f32.mrb[0].mxu0
        %917 = vmatprep.mubr.f32.mxu0 0.0
        %918 = vmatmul.mubr.f32.gmra.mrb[0].mxu0 %v828
        %v919 = vpop.f32.mrb[0].mxu0
        %v920 = vadd.f32 0.0, %v919
        %v921 = vpop.f32.mrb[0].mxu0
        %922 = vmatprep.mubr.f32.mxu0 0.0
        %923 = vmatmul.mubr.f32.gmra.mrb[0].mxu0 %v831
        %v924 = vpop.f32.mrb[0].mxu0
        %v925 = vadd.f32 0.0, %v924
        %v926 = vpop.f32.mrb[0].mxu0
        %927 = vmatprep.mubr.f32.mxu0 0.0
        %928 = vmatmul.mubr.f32.gmra.mrb[0].mxu0 %v834
        %v929 = vpop.f32.mrb[0].mxu0
        %v930 = vadd.f32 0.0, %v929
        %v931 = vpop.f32.mrb[0].mxu0
        %932 = vmatprep.mubr.f32.mxu0 0.0
        %933 = vmatmul.mubr.f32.gmra.mrb[0].mxu0 %v837
        %v934 = vpop.f32.mrb[0].mxu0
        %v935 = vadd.f32 0.0, %v934
        %v936 = vpop.f32.mrb[0].mxu0
        %937 = vmatprep.mubr.f32.mxu0 0.0
        %938 = vmatmul.mubr.f32.gmra.mrb[0].mxu0 %v840
        %v939 = vpop.f32.mrb[0].mxu0
        %v940 = vadd.f32 0.0, %v939
        %v941 = vpop.f32.mrb[0].mxu0
        %942 = vmatprep.mubr.f32.mxu0 0.0
        %943 = vmatmul.mubr.f32.gmra.mrb[0].mxu0 %v843
        %v944 = vpop.f32.mrb[0].mxu0
        %v945 = vadd.f32 0.0, %v944
        %v946 = vpop.f32.mrb[0].mxu0
        %947 = vmatprep.mubr.f32.mxu0 0.0
        %948 = vmatmul.mubr.f32.gmra.mrb[0].mxu0 %v846
        %v949 = vpop.f32.mrb[0].mxu0
        %v950 = vadd.f32 0.0, %v949
        %v951 = vpop.f32.mrb[0].mxu0
        %952 = vdwg.mxu0
        %955 = vrot.lane.b32.xlu0 %v925, 16
        %v956 = vpop.permute.xlu0 %955
        %957 = vrot.lane.b32.xlu0 %v930, 16
        %v958 = vpop.permute.xlu0 %957
        %963 = vrot.lane.b32.xlu0 %v935, 32
        %v964 = vpop.permute.xlu0 %963
        %965 = vrot.lane.b32.xlu0 %v940, 32
        %v966 = vpop.permute.xlu0 %965
        %971 = vrot.lane.b32.xlu0 %v945, 48
        %v972 = vpop.permute.xlu0 %971
        %973 = vrot.lane.b32.xlu0 %v950, 48
        %v974 = vpop.permute.xlu0 %973
        %v977 = vsel %vm333, %v915, %v956
        %v978 = vsel %vm333, %v920, %v958
        %v979 = vsel %vm489, %v977, %v964
        %v980 = vsel %vm489, %v978, %v966
        %v981 = vsel %vm492, %v979, %v972
        %v982 = vsel %vm492, %v980, %v974
        %983 = vmatprep.subr.mxu0 0.0
        %984 = vmatpush1.msra.mxu0 %v981
        %985 = vmatprep.subr.mxu0 0.0
        %986 = vmatpush1.msra.mxu0 %v982
        %987 = vmatprep.subr.mxu0 0.0
        %988 = vmatpush1.msra.mxu0 0.0
        %989 = vmatprep.subr.mxu0 0.0
        %990 = vmatpush1.msra.mxu0 0.0
        %991 = vmatprep.subr.mxu0 0.0
        %992 = vmatpush1.msra.mxu0 0.0
        %993 = vmatprep.subr.mxu0 0.0
        %994 = vmatpush1.msra.mxu0 0.0
        %995 = vmatprep.subr.mxu0 0.0
        %996 = vmatpush1.msra.mxu0 0.0
        %997 = vmatprep.subr.mxu0 0.0
        %998 = vmatpush1.msra.mxu0 0.0
        %999 = vmatprep.subr.mxu0 0.0
        %1000 = vmatpush1.msra.mxu0 0.0
        %1001 = vmatprep.subr.mxu0 0.0
        %1002 = vmatpush1.msra.mxu0 0.0
        %1003 = vmatprep.subr.mxu0 0.0
        %1004 = vmatpush1.msra.mxu0 0.0
        %1005 = vmatprep.subr.mxu0 0.0
        %1006 = vmatpush1.msra.mxu0 0.0
        %1007 = vmatprep.subr.mxu0 0.0
        %1008 = vmatpush1.msra.mxu0 0.0
        %1009 = vmatprep.subr.mxu0 0.0
        %1010 = vmatpush1.msra.mxu0 0.0
        %1011 = vmatprep.subr.mxu0 0.0
        %1012 = vmatpush1.msra.mxu0 0.0
        %1013 = vmatprep.subr.mxu0 0.0
        %1014 = vmatpush1.msra.mxu0 0.0
        %1015 = vmatprep.subr.mxu0 0.0
        %1016 = vmatpush1.msra.mxu0 0.0
        %1017 = vmatprep.subr.mxu0 0.0
        %1018 = vmatpush1.msra.mxu0 0.0
        %1019 = vmatprep.subr.mxu0 0.0
        %1020 = vmatpush1.msra.mxu0 0.0
        %1021 = vmatprep.subr.mxu0 0.0
        %1022 = vmatpush1.msra.mxu0 0.0
        %1023 = vmatprep.subr.mxu0 0.0
        %1024 = vmatpush1.msra.mxu0 0.0
        %1025 = vmatprep.subr.mxu0 0.0
        %1026 = vmatpush1.msra.mxu0 0.0
        %1027 = vmatprep.subr.mxu0 0.0
        %1028 = vmatpush1.msra.mxu0 0.0
        %1029 = vmatprep.subr.mxu0 0.0
        %1030 = vmatpush1.msra.mxu0 0.0
        %1031 = vmatprep.subr.mxu0 0.0
        %1032 = vmatpush1.msra.mxu0 0.0
        %1033 = vmatprep.subr.mxu0 0.0
        %1034 = vmatpush1.msra.mxu0 0.0
        %1035 = vmatprep.subr.mxu0 0.0
        %1036 = vmatpush1.msra.mxu0 0.0
        %1037 = vmatprep.subr.mxu0 0.0
        %1038 = vmatpush1.msra.mxu0 0.0
        %1039 = vmatprep.subr.mxu0 0.0
        %1040 = vmatpush1.msra.mxu0 0.0
        %1041 = vmatprep.subr.mxu0 0.0
        %1042 = vmatpush1.msra.mxu0 0.0
        %1043 = vmatprep.subr.mxu0 0.0
        %1044 = vmatpush1.msra.mxu0 0.0
        %1045 = vmatprep.subr.mxu0 0.0
        %1046 = vmatpush1.msra.mxu0 0.0
        %1047 = vmatprep.mubr.f32.mxu0 0.0
        %1048 = vmatmul.mubr.f32.gmra.mrb[0].mxu0 %v496
        %v1049 = vpop.f32.mrb[0].mxu0
        %v1050 = vadd.f32 0.0, %v1049
        %v1051 = vpop.f32.mrb[0].mxu0
        %1052 = vmatprep.mubr.f32.mxu0 0.0
        %1053 = vmatmul.mubr.f32.gmra.mrb[0].mxu0 %v499
        %v1054 = vpop.f32.mrb[0].mxu0
        %v1055 = vadd.f32 0.0, %v1054
        %v1056 = vpop.f32.mrb[0].mxu0
        %1057 = vdwg.mxu0
        %v1058 = vsub.f32 %v1050, %v810
        %v1059 = vsub.f32 %v1055, %v811
        %v1060 = vmul.f32 %v250, %v250
        %v1061 = vmul.f32 %v251, %v251
        %v1062 = vmul.f32 %v252, %v252
        %v1063 = vmul.f32 %v253, %v253
        %v1064 = vmul.f32 %v254, %v254
        %v1065 = vmul.f32 %v255, %v255
        %v1066 = vmul.f32 %v256, %v256
        %v1067 = vmul.f32 %v257, %v257
        %v1069 = vsel %vm333, %v1060, 0
        %v1072 = vsel %vm333, %v1061, 0
        %v1075 = vsel %vm333, %v1062, 0
        %v1078 = vsel %vm333, %v1063, 0
        %v1081 = vsel %vm333, %v1064, 0
        %v1084 = vsel %vm333, %v1065, 0
        %v1087 = vsel %vm333, %v1066, 0
        %v1090 = vsel %vm333, %v1067, 0
        %1092 = vmatprep.subr.mxu0 0.0
        %1093 = vmatpush1.msra.mxu0 %v331
        %1094 = vmatprep.subr.mxu0 0.0
        %1095 = vmatpush1.msra.mxu0 %v332
        %1096 = vmatprep.subr.mxu0 0.0
        %1097 = vmatpush1.msra.mxu0 0.0
        %1098 = vmatprep.subr.mxu0 0.0
        %1099 = vmatpush1.msra.mxu0 0.0
        %1100 = vmatprep.subr.mxu0 0.0
        %1101 = vmatpush1.msra.mxu0 0.0
        %1102 = vmatprep.subr.mxu0 0.0
        %1103 = vmatpush1.msra.mxu0 0.0
        %1104 = vmatprep.subr.mxu0 0.0
        %1105 = vmatpush1.msra.mxu0 0.0
        %1106 = vmatprep.subr.mxu0 0.0
        %1107 = vmatpush1.msra.mxu0 0.0
        %1108 = vmatprep.subr.mxu0 0.0
        %1109 = vmatpush1.msra.mxu0 0.0
        %1110 = vmatprep.subr.mxu0 0.0
        %1111 = vmatpush1.msra.mxu0 0.0
        %1112 = vmatprep.subr.mxu0 0.0
        %1113 = vmatpush1.msra.mxu0 0.0
        %1114 = vmatprep.subr.mxu0 0.0
        %1115 = vmatpush1.msra.mxu0 0.0
        %1116 = vmatprep.subr.mxu0 0.0
        %1117 = vmatpush1.msra.mxu0 0.0
        %1118 = vmatprep.subr.mxu0 0.0
        %1119 = vmatpush1.msra.mxu0 0.0
        %1120 = vmatprep.subr.mxu0 0.0
        %1121 = vmatpush1.msra.mxu0 0.0
        %1122 = vmatprep.subr.mxu0 0.0
        %1123 = vmatpush1.msra.mxu0 0.0
        %1124 = vmatprep.subr.mxu0 0.0
        %1125 = vmatpush1.msra.mxu0 0.0
        %1126 = vmatprep.subr.mxu0 0.0
        %1127 = vmatpush1.msra.mxu0 0.0
        %1128 = vmatprep.subr.mxu0 0.0
        %1129 = vmatpush1.msra.mxu0 0.0
        %1130 = vmatprep.subr.mxu0 0.0
        %1131 = vmatpush1.msra.mxu0 0.0
        %1132 = vmatprep.subr.mxu0 0.0
        %1133 = vmatpush1.msra.mxu0 0.0
        %1134 = vmatprep.subr.mxu0 0.0
        %1135 = vmatpush1.msra.mxu0 0.0
        %1136 = vmatprep.subr.mxu0 0.0
        %1137 = vmatpush1.msra.mxu0 0.0
        %1138 = vmatprep.subr.mxu0 0.0
        %1139 = vmatpush1.msra.mxu0 0.0
        %1140 = vmatprep.subr.mxu0 0.0
        %1141 = vmatpush1.msra.mxu0 0.0
        %1142 = vmatprep.subr.mxu0 0.0
        %1143 = vmatpush1.msra.mxu0 0.0
        %1144 = vmatprep.subr.mxu0 0.0
        %1145 = vmatpush1.msra.mxu0 0.0
        %1146 = vmatprep.subr.mxu0 0.0
        %1147 = vmatpush1.msra.mxu0 0.0
        %1148 = vmatprep.subr.mxu0 0.0
        %1149 = vmatpush1.msra.mxu0 0.0
        %1150 = vmatprep.subr.mxu0 0.0
        %1151 = vmatpush1.msra.mxu0 0.0
        %1152 = vmatprep.subr.mxu0 0.0
        %1153 = vmatpush1.msra.mxu0 0.0
        %1154 = vmatprep.subr.mxu0 0.0
        %1155 = vmatpush1.msra.mxu0 0.0
        %1156 = vmatprep.mubr.f32.mxu0 0.0
        %1157 = vmatmul.mubr.f32.gmra.mrb[0].mxu0 %v1069
        %v1158 = vpop.f32.mrb[0].mxu0
        %v1159 = vadd.f32 0.0, %v1158
        %v1160 = vpop.f32.mrb[0].mxu0
        %1161 = vmatprep.mubr.f32.mxu0 0.0
        %1162 = vmatmul.mubr.f32.gmra.mrb[0].mxu0 %v1072
        %v1163 = vpop.f32.mrb[0].mxu0
        %v1164 = vadd.f32 0.0, %v1163
        %v1165 = vpop.f32.mrb[0].mxu0
        %1166 = vmatprep.mubr.f32.mxu0 0.0
        %1167 = vmatmul.mubr.f32.gmra.mrb[0].mxu0 %v1075
        %v1168 = vpop.f32.mrb[0].mxu0
        %v1169 = vadd.f32 0.0, %v1168
        %v1170 = vpop.f32.mrb[0].mxu0
        %1171 = vmatprep.mubr.f32.mxu0 0.0
        %1172 = vmatmul.mubr.f32.gmra.mrb[0].mxu0 %v1078
        %v1173 = vpop.f32.mrb[0].mxu0
        %v1174 = vadd.f32 0.0, %v1173
        %v1175 = vpop.f32.mrb[0].mxu0
        %1176 = vmatprep.mubr.f32.mxu0 0.0
        %1177 = vmatmul.mubr.f32.gmra.mrb[0].mxu0 %v1081
        %v1178 = vpop.f32.mrb[0].mxu0
        %v1179 = vadd.f32 0.0, %v1178
        %v1180 = vpop.f32.mrb[0].mxu0
        %1181 = vmatprep.mubr.f32.mxu0 0.0
        %1182 = vmatmul.mubr.f32.gmra.mrb[0].mxu0 %v1084
        %v1183 = vpop.f32.mrb[0].mxu0
        %v1184 = vadd.f32 0.0, %v1183
        %v1185 = vpop.f32.mrb[0].mxu0
        %1186 = vmatprep.mubr.f32.mxu0 0.0
        %1187 = vmatmul.mubr.f32.gmra.mrb[0].mxu0 %v1087
        %v1188 = vpop.f32.mrb[0].mxu0
        %v1189 = vadd.f32 0.0, %v1188
        %v1190 = vpop.f32.mrb[0].mxu0
        %1191 = vmatprep.mubr.f32.mxu0 0.0
        %1192 = vmatmul.mubr.f32.gmra.mrb[0].mxu0 %v1090
        %v1193 = vpop.f32.mrb[0].mxu0
        %v1194 = vadd.f32 0.0, %v1193
        %v1195 = vpop.f32.mrb[0].mxu0
        %1196 = vdwg.mxu0
        %1199 = vrot.lane.b32.xlu0 %v1169, 16
        %v1200 = vpop.permute.xlu0 %1199
        %1201 = vrot.lane.b32.xlu0 %v1174, 16
        %v1202 = vpop.permute.xlu0 %1201
        %1207 = vrot.lane.b32.xlu0 %v1179, 32
        %v1208 = vpop.permute.xlu0 %1207
        %1209 = vrot.lane.b32.xlu0 %v1184, 32
        %v1210 = vpop.permute.xlu0 %1209
        %1215 = vrot.lane.b32.xlu0 %v1189, 48
        %v1216 = vpop.permute.xlu0 %1215
        %1217 = vrot.lane.b32.xlu0 %v1194, 48
        %v1218 = vpop.permute.xlu0 %1217
        %v1221 = vsel %vm333, %v1159, %v1200
        %v1222 = vsel %vm333, %v1164, %v1202
        %v1223 = vsel %vm489, %v1221, %v1208
        %v1224 = vsel %vm489, %v1222, %v1210
        %v1225 = vsel %vm492, %v1223, %v1216
        %v1226 = vsel %vm492, %v1224, %v1218
        %1227 = vmatprep.subr.mxu0 0.0
        %1228 = vmatpush1.msra.mxu0 %v1225
        %1229 = vmatprep.subr.mxu0 0.0
        %1230 = vmatpush1.msra.mxu0 %v1226
        %1231 = vmatprep.subr.mxu0 0.0
        %1232 = vmatpush1.msra.mxu0 0.0
        %1233 = vmatprep.subr.mxu0 0.0
        %1234 = vmatpush1.msra.mxu0 0.0
        %1235 = vmatprep.subr.mxu0 0.0
        %1236 = vmatpush1.msra.mxu0 0.0
        %1237 = vmatprep.subr.mxu0 0.0
        %1238 = vmatpush1.msra.mxu0 0.0
        %1239 = vmatprep.subr.mxu0 0.0
        %1240 = vmatpush1.msra.mxu0 0.0
        %1241 = vmatprep.subr.mxu0 0.0
        %1242 = vmatpush1.msra.mxu0 0.0
        %1243 = vmatprep.subr.mxu0 0.0
        %1244 = vmatpush1.msra.mxu0 0.0
        %1245 = vmatprep.subr.mxu0 0.0
        %1246 = vmatpush1.msra.mxu0 0.0
        %1247 = vmatprep.subr.mxu0 0.0
        %1248 = vmatpush1.msra.mxu0 0.0
        %1249 = vmatprep.subr.mxu0 0.0
        %1250 = vmatpush1.msra.mxu0 0.0
        %1251 = vmatprep.subr.mxu0 0.0
        %1252 = vmatpush1.msra.mxu0 0.0
        %1253 = vmatprep.subr.mxu0 0.0
        %1254 = vmatpush1.msra.mxu0 0.0
        %1255 = vmatprep.subr.mxu0 0.0
        %1256 = vmatpush1.msra.mxu0 0.0
        %1257 = vmatprep.subr.mxu0 0.0
        %1258 = vmatpush1.msra.mxu0 0.0
        %1259 = vmatprep.subr.mxu0 0.0
        %1260 = vmatpush1.msra.mxu0 0.0
        %1261 = vmatprep.subr.mxu0 0.0
        %1262 = vmatpush1.msra.mxu0 0.0
        %1263 = vmatprep.subr.mxu0 0.0
        %1264 = vmatpush1.msra.mxu0 0.0
        %1265 = vmatprep.subr.mxu0 0.0
        %1266 = vmatpush1.msra.mxu0 0.0
        %1267 = vmatprep.subr.mxu0 0.0
        %1268 = vmatpush1.msra.mxu0 0.0
        %1269 = vmatprep.subr.mxu0 0.0
        %1270 = vmatpush1.msra.mxu0 0.0
        %1271 = vmatprep.subr.mxu0 0.0
        %1272 = vmatpush1.msra.mxu0 0.0
        %1273 = vmatprep.subr.mxu0 0.0
        %1274 = vmatpush1.msra.mxu0 0.0
        %1275 = vmatprep.subr.mxu0 0.0
        %1276 = vmatpush1.msra.mxu0 0.0
        %1277 = vmatprep.subr.mxu0 0.0
        %1278 = vmatpush1.msra.mxu0 0.0
        %1279 = vmatprep.subr.mxu0 0.0
        %1280 = vmatpush1.msra.mxu0 0.0
        %1281 = vmatprep.subr.mxu0 0.0
        %1282 = vmatpush1.msra.mxu0 0.0
        %1283 = vmatprep.subr.mxu0 0.0
        %1284 = vmatpush1.msra.mxu0 0.0
        %1285 = vmatprep.subr.mxu0 0.0
        %1286 = vmatpush1.msra.mxu0 0.0
        %1287 = vmatprep.subr.mxu0 0.0
        %1288 = vmatpush1.msra.mxu0 0.0
        %1289 = vmatprep.subr.mxu0 0.0
        %1290 = vmatpush1.msra.mxu0 0.0
        %1291 = vmatprep.mubr.f32.mxu0 0.0
        %1292 = vmatmul.mubr.f32.gmra.mrb[0].mxu0 %v496
        %v1293 = vpop.f32.mrb[0].mxu0
        %v1294 = vadd.f32 0.0, %v1293
        %v1295 = vpop.f32.mrb[0].mxu0
        %1296 = vmatprep.mubr.f32.mxu0 0.0
        %1297 = vmatmul.mubr.f32.gmra.mrb[0].mxu0 %v499
        %v1298 = vpop.f32.mrb[0].mxu0
        %v1299 = vadd.f32 0.0, %v1298
        %v1300 = vpop.f32.mrb[0].mxu0
        %1301 = vdwg.mxu0
        %v1302 = vsub.f32 %v1294, %v812
        %v1303 = vsub.f32 %v1299, %v813
        %v1304 = vmul.f32 %v242, %v250
        %v1305 = vmul.f32 %v243, %v251
        %v1306 = vmul.f32 %v244, %v252
        %v1307 = vmul.f32 %v245, %v253
        %v1308 = vmul.f32 %v246, %v254
        %v1309 = vmul.f32 %v247, %v255
        %v1310 = vmul.f32 %v248, %v256
        %v1311 = vmul.f32 %v249, %v257
        %v1313 = vsel %vm333, %v1304, 0
        %v1316 = vsel %vm333, %v1305, 0
        %v1319 = vsel %vm333, %v1306, 0
        %v1322 = vsel %vm333, %v1307, 0
        %v1325 = vsel %vm333, %v1308, 0
        %v1328 = vsel %vm333, %v1309, 0
        %v1331 = vsel %vm333, %v1310, 0
        %v1334 = vsel %vm333, %v1311, 0
        %1336 = vmatprep.subr.mxu0 0.0
        %1337 = vmatpush1.msra.mxu0 %v331
        %1338 = vmatprep.subr.mxu0 0.0
        %1339 = vmatpush1.msra.mxu0 %v332
        %1340 = vmatprep.subr.mxu0 0.0
        %1341 = vmatpush1.msra.mxu0 0.0
        %1342 = vmatprep.subr.mxu0 0.0
        %1343 = vmatpush1.msra.mxu0 0.0
        %1344 = vmatprep.subr.mxu0 0.0
        %1345 = vmatpush1.msra.mxu0 0.0
        %1346 = vmatprep.subr.mxu0 0.0
        %1347 = vmatpush1.msra.mxu0 0.0
        %1348 = vmatprep.subr.mxu0 0.0
        %1349 = vmatpush1.msra.mxu0 0.0
        %1350 = vmatprep.subr.mxu0 0.0
        %1351 = vmatpush1.msra.mxu0 0.0
        %1352 = vmatprep.subr.mxu0 0.0
        %1353 = vmatpush1.msra.mxu0 0.0
        %1354 = vmatprep.subr.mxu0 0.0
        %1355 = vmatpush1.msra.mxu0 0.0
        %1356 = vmatprep.subr.mxu0 0.0
        %1357 = vmatpush1.msra.mxu0 0.0
        %1358 = vmatprep.subr.mxu0 0.0
        %1359 = vmatpush1.msra.mxu0 0.0
        %1360 = vmatprep.subr.mxu0 0.0
        %1361 = vmatpush1.msra.mxu0 0.0
        %1362 = vmatprep.subr.mxu0 0.0
        %1363 = vmatpush1.msra.mxu0 0.0
        %1364 = vmatprep.subr.mxu0 0.0
        %1365 = vmatpush1.msra.mxu0 0.0
        %1366 = vmatprep.subr.mxu0 0.0
        %1367 = vmatpush1.msra.mxu0 0.0
        %1368 = vmatprep.subr.mxu0 0.0
        %1369 = vmatpush1.msra.mxu0 0.0
        %1370 = vmatprep.subr.mxu0 0.0
        %1371 = vmatpush1.msra.mxu0 0.0
        %1372 = vmatprep.subr.mxu0 0.0
        %1373 = vmatpush1.msra.mxu0 0.0
        %1374 = vmatprep.subr.mxu0 0.0
        %1375 = vmatpush1.msra.mxu0 0.0
        %1376 = vmatprep.subr.mxu0 0.0
        %1377 = vmatpush1.msra.mxu0 0.0
        %1378 = vmatprep.subr.mxu0 0.0
        %1379 = vmatpush1.msra.mxu0 0.0
        %1380 = vmatprep.subr.mxu0 0.0
        %1381 = vmatpush1.msra.mxu0 0.0
        %1382 = vmatprep.subr.mxu0 0.0
        %1383 = vmatpush1.msra.mxu0 0.0
        %1384 = vmatprep.subr.mxu0 0.0
        %1385 = vmatpush1.msra.mxu0 0.0
        %1386 = vmatprep.subr.mxu0 0.0
        %1387 = vmatpush1.msra.mxu0 0.0
        %1388 = vmatprep.subr.mxu0 0.0
        %1389 = vmatpush1.msra.mxu0 0.0
        %1390 = vmatprep.subr.mxu0 0.0
        %1391 = vmatpush1.msra.mxu0 0.0
        %1392 = vmatprep.subr.mxu0 0.0
        %1393 = vmatpush1.msra.mxu0 0.0
        %1394 = vmatprep.subr.mxu0 0.0
        %1395 = vmatpush1.msra.mxu0 0.0
        %1396 = vmatprep.subr.mxu0 0.0
        %1397 = vmatpush1.msra.mxu0 0.0
        %1398 = vmatprep.subr.mxu0 0.0
        %1399 = vmatpush1.msra.mxu0 0.0
        %1400 = vmatprep.mubr.f32.mxu0 0.0
        %1401 = vmatmul.mubr.f32.gmra.mrb[0].mxu0 %v1313
        %v1402 = vpop.f32.mrb[0].mxu0
        %v1403 = vadd.f32 0.0, %v1402
        %v1404 = vpop.f32.mrb[0].mxu0
        %1405 = vmatprep.mubr.f32.mxu0 0.0
        %1406 = vmatmul.mubr.f32.gmra.mrb[0].mxu0 %v1316
        %v1407 = vpop.f32.mrb[0].mxu0
        %v1408 = vadd.f32 0.0, %v1407
        %v1409 = vpop.f32.mrb[0].mxu0
        %1410 = vmatprep.mubr.f32.mxu0 0.0
        %1411 = vmatmul.mubr.f32.gmra.mrb[0].mxu0 %v1319
        %v1412 = vpop.f32.mrb[0].mxu0
        %v1413 = vadd.f32 0.0, %v1412
        %v1414 = vpop.f32.mrb[0].mxu0
        %1415 = vmatprep.mubr.f32.mxu0 0.0
        %1416 = vmatmul.mubr.f32.gmra.mrb[0].mxu0 %v1322
        %v1417 = vpop.f32.mrb[0].mxu0
        %v1418 = vadd.f32 0.0, %v1417
        %v1419 = vpop.f32.mrb[0].mxu0
        %1420 = vmatprep.mubr.f32.mxu0 0.0
        %1421 = vmatmul.mubr.f32.gmra.mrb[0].mxu0 %v1325
        %v1422 = vpop.f32.mrb[0].mxu0
        %v1423 = vadd.f32 0.0, %v1422
        %v1424 = vpop.f32.mrb[0].mxu0
        %1425 = vmatprep.mubr.f32.mxu0 0.0
        %1426 = vmatmul.mubr.f32.gmra.mrb[0].mxu0 %v1328
        %v1427 = vpop.f32.mrb[0].mxu0
        %v1428 = vadd.f32 0.0, %v1427
        %v1429 = vpop.f32.mrb[0].mxu0
        %1430 = vmatprep.mubr.f32.mxu0 0.0
        %1431 = vmatmul.mubr.f32.gmra.mrb[0].mxu0 %v1331
        %v1432 = vpop.f32.mrb[0].mxu0
        %v1433 = vadd.f32 0.0, %v1432
        %v1434 = vpop.f32.mrb[0].mxu0
        %1435 = vmatprep.mubr.f32.mxu0 0.0
        %1436 = vmatmul.mubr.f32.gmra.mrb[0].mxu0 %v1334
        %v1437 = vpop.f32.mrb[0].mxu0
        %v1438 = vadd.f32 0.0, %v1437
        %v1439 = vpop.f32.mrb[0].mxu0
        %1440 = vdwg.mxu0
        %1443 = vrot.lane.b32.xlu0 %v1413, 16
        %v1444 = vpop.permute.xlu0 %1443
        %1445 = vrot.lane.b32.xlu0 %v1418, 16
        %v1446 = vpop.permute.xlu0 %1445
        %1451 = vrot.lane.b32.xlu0 %v1423, 32
        %v1452 = vpop.permute.xlu0 %1451
        %1453 = vrot.lane.b32.xlu0 %v1428, 32
        %v1454 = vpop.permute.xlu0 %1453
        %1459 = vrot.lane.b32.xlu0 %v1433, 48
        %v1460 = vpop.permute.xlu0 %1459
        %1461 = vrot.lane.b32.xlu0 %v1438, 48
        %v1462 = vpop.permute.xlu0 %1461
        %v1465 = vsel %vm333, %v1403, %v1444
        %v1466 = vsel %vm333, %v1408, %v1446
        %v1467 = vsel %vm489, %v1465, %v1452
        %v1468 = vsel %vm489, %v1466, %v1454
        %v1469 = vsel %vm492, %v1467, %v1460
        %v1470 = vsel %vm492, %v1468, %v1462
        %1471 = vmatprep.subr.mxu0 0.0
        %1472 = vmatpush1.msra.mxu0 %v1469
        %1473 = vmatprep.subr.mxu0 0.0
        %1474 = vmatpush1.msra.mxu0 %v1470
        %1475 = vmatprep.subr.mxu0 0.0
        %1476 = vmatpush1.msra.mxu0 0.0
        %1477 = vmatprep.subr.mxu0 0.0
        %1478 = vmatpush1.msra.mxu0 0.0
        %1479 = vmatprep.subr.mxu0 0.0
        %1480 = vmatpush1.msra.mxu0 0.0
        %1481 = vmatprep.subr.mxu0 0.0
        %1482 = vmatpush1.msra.mxu0 0.0
        %1483 = vmatprep.subr.mxu0 0.0
        %1484 = vmatpush1.msra.mxu0 0.0
        %1485 = vmatprep.subr.mxu0 0.0
        %1486 = vmatpush1.msra.mxu0 0.0
        %1487 = vmatprep.subr.mxu0 0.0
        %1488 = vmatpush1.msra.mxu0 0.0
        %1489 = vmatprep.subr.mxu0 0.0
        %1490 = vmatpush1.msra.mxu0 0.0
        %1491 = vmatprep.subr.mxu0 0.0
        %1492 = vmatpush1.msra.mxu0 0.0
        %1493 = vmatprep.subr.mxu0 0.0
        %1494 = vmatpush1.msra.mxu0 0.0
        %1495 = vmatprep.subr.mxu0 0.0
        %1496 = vmatpush1.msra.mxu0 0.0
        %1497 = vmatprep.subr.mxu0 0.0
        %1498 = vmatpush1.msra.mxu0 0.0
        %1499 = vmatprep.subr.mxu0 0.0
        %1500 = vmatpush1.msra.mxu0 0.0
        %1501 = vmatprep.subr.mxu0 0.0
        %1502 = vmatpush1.msra.mxu0 0.0
        %1503 = vmatprep.subr.mxu0 0.0
        %1504 = vmatpush1.msra.mxu0 0.0
        %1505 = vmatprep.subr.mxu0 0.0
        %1506 = vmatpush1.msra.mxu0 0.0
        %1507 = vmatprep.subr.mxu0 0.0
        %1508 = vmatpush1.msra.mxu0 0.0
        %1509 = vmatprep.subr.mxu0 0.0
        %1510 = vmatpush1.msra.mxu0 0.0
        %1511 = vmatprep.subr.mxu0 0.0
        %1512 = vmatpush1.msra.mxu0 0.0
        %1513 = vmatprep.subr.mxu0 0.0
        %1514 = vmatpush1.msra.mxu0 0.0
        %1515 = vmatprep.subr.mxu0 0.0
        %1516 = vmatpush1.msra.mxu0 0.0
        %1517 = vmatprep.subr.mxu0 0.0
        %1518 = vmatpush1.msra.mxu0 0.0
        %1519 = vmatprep.subr.mxu0 0.0
        %1520 = vmatpush1.msra.mxu0 0.0
        %1521 = vmatprep.subr.mxu0 0.0
        %1522 = vmatpush1.msra.mxu0 0.0
        %1523 = vmatprep.subr.mxu0 0.0
        %1524 = vmatpush1.msra.mxu0 0.0
        %1525 = vmatprep.subr.mxu0 0.0
        %1526 = vmatpush1.msra.mxu0 0.0
        %1527 = vmatprep.subr.mxu0 0.0
        %1528 = vmatpush1.msra.mxu0 0.0
        %1529 = vmatprep.subr.mxu0 0.0
        %1530 = vmatpush1.msra.mxu0 0.0
        %1531 = vmatprep.subr.mxu0 0.0
        %1532 = vmatpush1.msra.mxu0 0.0
        %1533 = vmatprep.subr.mxu0 0.0
        %1534 = vmatpush1.msra.mxu0 0.0
        %1535 = vmatprep.mubr.f32.mxu0 0.0
        %1536 = vmatmul.mubr.f32.gmra.mrb[0].mxu0 %v496
        %v1537 = vpop.f32.mrb[0].mxu0
        %v1538 = vadd.f32 0.0, %v1537
        %v1539 = vpop.f32.mrb[0].mxu0
        %1540 = vmatprep.mubr.f32.mxu0 0.0
        %1541 = vmatmul.mubr.f32.gmra.mrb[0].mxu0 %v499
        %v1542 = vpop.f32.mrb[0].mxu0
        %v1543 = vadd.f32 0.0, %v1542
        %v1544 = vpop.f32.mrb[0].mxu0
        %1545 = vdwg.mxu0
        %v1546 = vsub.f32 %v1538, %v814
        %v1547 = vsub.f32 %v1543, %v815
        %v1548 = vmul.f32 %v814, 2.0
        %v1549 = vmul.f32 %v815, 2.0
        %v1550 = vadd.f32 %v1548, 0.0001
        %v1551 = vadd.f32 %v1549, 0.0001
        %v1552 = vmul.f32 %v1546, 2.0
        %v1553 = vmul.f32 %v1547, 2.0
        %v1554 = vadd.f32 %v1552, 0.0009
        %v1555 = vadd.f32 %v1553, 0.0009
        %v1556 = vmul.f32 %v1550, %v1554
        %v1557 = vmul.f32 %v1551, %v1555
        %v1558 = vadd.f32 %v810, %v812
        %v1559 = vadd.f32 %v811, %v813
        %v1560 = vadd.f32 %v1558, 0.0001
        %v1561 = vadd.f32 %v1559, 0.0001
        %v1562 = vadd.f32 %v1058, %v1302
        %v1563 = vadd.f32 %v1059, %v1303
        %v1564 = vadd.f32 %v1562, 0.0009
        %v1565 = vadd.f32 %v1563, 0.0009
        %v1566 = vmul.f32 %v1560, %v1564
        %v1567 = vmul.f32 %v1561, %v1565
        %v1568 = vrcp.pop %v1566
        %v1569 = vrcp.pop %v1567
        %v1570 = vmul.f32 %v1566, %v1568
        %v1571 = vmul.f32 %v1567, %v1569
        %v1572 = vsub.f32 2.0, %v1570
        %v1573 = vsub.f32 2.0, %v1571
        %v1574 = vmul.f32 %v1568, %v1572
        %v1575 = vmul.f32 %v1569, %v1573
        %v1576 = vmul.f32 %v1556, %v1574
        %v1577 = vmul.f32 %v1557, %v1575
        %v1578 = vlog2.pop %v242
        %v1579 = vmul.f32 %v1578, 0.6931472
        %v1580 = vlog2.pop %v243
        %v1581 = vmul.f32 %v1580, 0.6931472
        %v1582 = vlog2.pop %v244
        %v1583 = vmul.f32 %v1582, 0.6931472
        %v1584 = vlog2.pop %v245
        %v1585 = vmul.f32 %v1584, 0.6931472
        %v1586 = vlog2.pop %v246
        %v1587 = vmul.f32 %v1586, 0.6931472
        %v1588 = vlog2.pop %v247
        %v1589 = vmul.f32 %v1588, 0.6931472
        %v1590 = vlog2.pop %v248
        %v1591 = vmul.f32 %v1590, 0.6931472
        %v1592 = vlog2.pop %v249
        %v1593 = vmul.f32 %v1592, 0.6931472
        %v1594 = vmax.f32 %v1579, -100.0
        %v1595 = vmax.f32 %v1581, -100.0
        %v1596 = vmax.f32 %v1583, -100.0
        %v1597 = vmax.f32 %v1585, -100.0
        %v1598 = vmax.f32 %v1587, -100.0
        %v1599 = vmax.f32 %v1589, -100.0
        %v1600 = vmax.f32 %v1591, -100.0
        %v1601 = vmax.f32 %v1593, -100.0
        %v1602 = vsub.f32 1.0, %v242
        %v1603 = vsub.f32 1.0, %v243
        %v1604 = vsub.f32 1.0, %v244
        %v1605 = vsub.f32 1.0, %v245
        %v1606 = vsub.f32 1.0, %v246
        %v1607 = vsub.f32 1.0, %v247
        %v1608 = vsub.f32 1.0, %v248
        %v1609 = vsub.f32 1.0, %v249
        %v1610 = vlog2.pop %v1602
        %v1611 = vmul.f32 %v1610, 0.6931472
        %v1612 = vlog2.pop %v1603
        %v1613 = vmul.f32 %v1612, 0.6931472
        %v1614 = vlog2.pop %v1604
        %v1615 = vmul.f32 %v1614, 0.6931472
        %v1616 = vlog2.pop %v1605
        %v1617 = vmul.f32 %v1616, 0.6931472
        %v1618 = vlog2.pop %v1606
        %v1619 = vmul.f32 %v1618, 0.6931472
        %v1620 = vlog2.pop %v1607
        %v1621 = vmul.f32 %v1620, 0.6931472
        %v1622 = vlog2.pop %v1608
        %v1623 = vmul.f32 %v1622, 0.6931472
        %v1624 = vlog2.pop %v1609
        %v1625 = vmul.f32 %v1624, 0.6931472
        %v1626 = vmax.f32 %v1611, -100.0
        %v1627 = vmax.f32 %v1613, -100.0
        %v1628 = vmax.f32 %v1615, -100.0
        %v1629 = vmax.f32 %v1617, -100.0
        %v1630 = vmax.f32 %v1619, -100.0
        %v1631 = vmax.f32 %v1621, -100.0
        %v1632 = vmax.f32 %v1623, -100.0
        %v1633 = vmax.f32 %v1625, -100.0
        %v1634 = vmul.f32 %v250, %v1594
        %v1635 = vmul.f32 %v251, %v1595
        %v1636 = vmul.f32 %v252, %v1596
        %v1637 = vmul.f32 %v253, %v1597
        %v1638 = vmul.f32 %v254, %v1598
        %v1639 = vmul.f32 %v255, %v1599
        %v1640 = vmul.f32 %v256, %v1600
        %v1641 = vmul.f32 %v257, %v1601
        %v1642 = vsub.f32 1.0, %v250
        %v1643 = vsub.f32 1.0, %v251
        %v1644 = vsub.f32 1.0, %v252
        %v1645 = vsub.f32 1.0, %v253
        %v1646 = vsub.f32 1.0, %v254
        %v1647 = vsub.f32 1.0, %v255
        %v1648 = vsub.f32 1.0, %v256
        %v1649 = vsub.f32 1.0, %v257
        %v1650 = vmul.f32 %v1642, %v1626
        %v1651 = vmul.f32 %v1643, %v1627
        %v1652 = vmul.f32 %v1644, %v1628
        %v1653 = vmul.f32 %v1645, %v1629
        %v1654 = vmul.f32 %v1646, %v1630
        %v1655 = vmul.f32 %v1647, %v1631
        %v1656 = vmul.f32 %v1648, %v1632
        %v1657 = vmul.f32 %v1649, %v1633
        %v1658 = vadd.f32 %v1634, %v1650
        %v1659 = vadd.f32 %v1635, %v1651
        %v1660 = vadd.f32 %v1636, %v1652
        %v1661 = vadd.f32 %v1637, %v1653
        %v1662 = vadd.f32 %v1638, %v1654
        %v1663 = vadd.f32 %v1639, %v1655
        %v1664 = vadd.f32 %v1640, %v1656
        %v1665 = vadd.f32 %v1641, %v1657
        %v1666 = vsub.f32 0.0, %v1658
        %v1667 = vsub.f32 0.0, %v1659
        %v1668 = vsub.f32 0.0, %v1660
        %v1669 = vsub.f32 0.0, %v1661
        %v1670 = vsub.f32 0.0, %v1662
        %v1671 = vsub.f32 0.0, %v1663
        %v1672 = vsub.f32 0.0, %v1664
        %v1673 = vsub.f32 0.0, %v1665
        %v1674 = vsel %vm333, %v1666, 0.0
        %v1675 = vsel %vm333, %v1667, 0.0
        %v1676 = vadd.f32 %v1674, %v1675
        %v1677 = vsel %vm333, %v1668, 0.0
        %v1678 = vadd.f32 %v1676, %v1677
        %v1679 = vsel %vm333, %v1669, 0.0
        %v1680 = vadd.f32 %v1678, %v1679
        %v1681 = vsel %vm333, %v1670, 0.0
        %v1682 = vadd.f32 %v1680, %v1681
        %v1683 = vsel %vm333, %v1671, 0.0
        %v1684 = vadd.f32 %v1682, %v1683
        %v1685 = vsel %vm333, %v1672, 0.0
        %v1686 = vadd.f32 %v1684, %v1685
        %v1687 = vsel %vm333, %v1673, 0.0
        %v1688 = vadd.f32 %v1686, %v1687
        %v1689 = vrot.slane %v1688, 4
        %v1690 = vadd.f32 %v1688, %v1689
        %v1691 = vrot.slane %v1690, 2
        %v1692 = vadd.f32 %v1690, %v1691
        %v1693 = vrot.slane %v1692, 1
        %v1694 = vadd.f32 %v1692, %v1693
        %vm1695 = vcmask 122880
        %1696 = vst.msk [vmem:[%s233] sm:$0x1] %vm1695, %v1694
        %vm1697 = vcmask 523264
        %v1698 = vsel %vm1697, %v1576, 0.0
        %v1699 = vsel %vm1697, %v1577, 0.0
        %v1700 = vadd.f32 %v1698, %v1699
        %v1701 = vrot.slane %v1700, 4
        %v1702 = vadd.f32 %v1700, %v1701
        %v1703 = vrot.slane %v1702, 2
        %v1704 = vadd.f32 %v1702, %v1703
        %v1705 = vrot.slane %v1704, 1
        %v1706 = vadd.f32 %v1704, %v1705
        %vm1707 = vcmask 516096
        %1708 = vst.msk [vmem:[%s239] sm:$0x1] %vm1707, %v1706
        %s1709 = sand.u32 %s87, 1
        %s1710 = scalar_lea.sflag [#allocation4], %s1709
        %s1711 = sand.u32 %s87, 1
        %s1712 = scalar_lea.vmem [#allocation7], %s1711
        %s1713 = sand.u32 %s113, 1
        %s1714 = scalar_lea.sflag [#allocation9], %s1713
        %s1715 = sand.u32 %s113, 1
        %s1716 = scalar_lea.vmem [#allocation8], %s1715
        // Predicated region
        $region37: #{tpu_custom_call.1} parent=27 // pred_check
          %p1717 = pneg %p97
        $region38: #{tpu_custom_call.1} parent=27 // pred_check_branch
          %1719 = sbr.rel (%p1717) target = $region40
        $region39: #{tpu_custom_call.1} parent=27 // pred_region
          %s1721 = ssub.s32 16, 16
          %1722 = vsyncadd %s1710, %s1721
          %s1723 = smul.addr %s27, 16
          %s1724 = scalar_lea.hbm %s2, %s1723
          %s1726 = sshll.u32 %s1712, 4
          %s1727 = int_to_ptr.vmem [resolvable:$true] %s1726
          %1729 = dma.vmem_to_hbm [thread:$0]  %s1727, 16, %s1724, %s1710
        $region40: #{tpu_custom_call.1} parent=27 // pred_fallthru
          _
        // Predicated region
        $region41: #{tpu_custom_call.1} parent=27 // pred_check
          %p1730 = pneg %p123
        $region42: #{tpu_custom_call.1} parent=27 // pred_check_branch
          %1732 = sbr.rel (%p1730) target = $region44
        $region43: #{tpu_custom_call.1} parent=27 // pred_region
          %s1734 = ssub.s32 16, 16
          %1735 = vsyncadd %s1714, %s1734
          %s1736 = smul.addr %s27, 16
          %s1737 = scalar_lea.hbm %s3, %s1736
          %s1739 = sshll.u32 %s1716, 4
          %s1740 = int_to_ptr.vmem [resolvable:$true] %s1739
          %1742 = dma.vmem_to_hbm [thread:$0]  %s1740, 16, %s1737, %s1714
        $region44: #{tpu_custom_call.1} parent=27 // pred_fallthru
          _
      $region28: #{tpu_custom_call.1} parent=5 // pred_fallthru
        _
      %p1743 = scmp.le.s32.totalorder 2, %s22
      // Predicated region
      $region45: #{tpu_custom_call.1} parent=5 // pred_check
        %p1744 = pneg %p1743
      $region46: #{tpu_custom_call.1} parent=5 // pred_check_branch
        %1746 = sbr.rel (%p1744) target = $region48
      $region47: #{tpu_custom_call.1} parent=5 // pred_region
        %s1747 = ssub.s32 %s22, 2
        // Predicated region
        $region49: #{tpu_custom_call.1} parent=47 // pred_check
          %p1748 = pneg %p103
        $region50: #{tpu_custom_call.1} parent=47 // pred_check_branch
          %1750 = sbr.rel (%p1748) target = $region52
        $region51: #{tpu_custom_call.1} parent=47 // pred_region
          %s1751 = sand.u32 %s88, 1
          %s1752 = scalar_lea.sflag [#allocation4], %s1751
          %s1753 = sand.u32 %s88, 1
          %s1754 = scalar_lea.vmem [#allocation7], %s1753
          %1755 = dma.done %s1752, 16
        $region52: #{tpu_custom_call.1} parent=47 // pred_fallthru
          _
        // Predicated region
        $region53: #{tpu_custom_call.1} parent=47 // pred_check
          %p1756 = pneg %p129
        $region54: #{tpu_custom_call.1} parent=47 // pred_check_branch
          %1758 = sbr.rel (%p1756) target = $region56
        $region55: #{tpu_custom_call.1} parent=47 // pred_region
          %s1759 = sand.u32 %s114, 1
          %s1760 = scalar_lea.sflag [#allocation9], %s1759
          %s1761 = sand.u32 %s114, 1
          %s1762 = scalar_lea.vmem [#allocation8], %s1761
          %1763 = dma.done %s1760, 16
        $region56: #{tpu_custom_call.1} parent=47 // pred_fallthru
          _
      $region48: #{tpu_custom_call.1} parent=5 // pred_fallthru
        _
    $region6: #{tpu_custom_call.1} parent=1 // loop_footer
      %s26 = sadd.s32 1, %s22
    $region7: #{tpu_custom_call.1} parent=1 // loop_footer_branch
      %21 = sbr.rel target = $region3
    $region8: #{tpu_custom_call.1} parent=1 // loop_exit
      _
    %1764 = vsyncpa [#allocation3], 1
    %s1765 = scalar_lea.sflag [#allocation3], 1
    %1766 = vsyncpa %s1765, 1
    %1767 = vsyncpa [#allocation6], 1
    %s1768 = scalar_lea.sflag [#allocation6], 1
    %1769 = vsyncpa %s1768, 1
    %1770 = vsyncpa [#allocation4], 1
    %s1771 = scalar_lea.sflag [#allocation4], 1
    %1772 = vsyncpa %s1771, 1
    %1773 = vsyncpa [#allocation9], 1
    %s1774 = scalar_lea.sflag [#allocation9], 1
    %1775 = vsyncpa %s1774, 1

</llo_original>
